<compile_context>
chip_gen: v6e
topology: v6e:2x2x1
jax: 0.10.0
libtpu: 0.0.40
codegen_flags: <defaults>
</compile_context>

<pallas_src>
import functools

import jax
import jax.numpy as jnp
from jax.experimental import pallas as pl
from jax.experimental.pallas import tpu as pltpu


def _gelu_tanh(x):
    # TODO(synk): PyTorch F.gelu defaults to the exact erf form; we use the tanh
    # approximation (== jax.nn.gelu(approximate=True)) since tanh has a guaranteed
    # EUP lowering in Mosaic.
    c0 = 0.7978845608028654  # sqrt(2/pi)
    return 0.5 * x * (1.0 + jnp.tanh(c0 * (x + 0.044715 * x * x * x)))


def _conv_block_kernel(x_ref, gid_ref, w1_ref, b1_ref, g1_ref, beta1_ref,
                       w2_ref, b2_ref, g2_ref, beta2_ref, o_ref, *, groups, eps):
    H = x_ref.shape[1]
    wc_out = o_ref.shape[2]
    n_grp = float(H * wc_out) / groups  # elements per (sample, group)

    # Constant 0/1 row-shift matrices: s_up picks row y+1 (zero at y=H-1), s_dn
    # picks row y-1 (zero at y=0).  Exact selection -> handles top/bottom padding.
    row_i = jax.lax.broadcasted_iota(jnp.int32, (H, H), 0)
    col_j = jax.lax.broadcasted_iota(jnp.int32, (H, H), 1)
    s_up = (col_j == row_i + 1).astype(jnp.float32)
    s_dn = (col_j == row_i - 1).astype(jnp.float32)
    gid = gid_ref[...]                                  # (1, W*C_out) group id per lane

    def conv3x3(x2d, w_ref):
        # x2d: (H, W*Cin') f32;  w_ref: (3, W*Cin', W*C_out) bf16 block-Toeplitz
        # weights (dx taps + left/right padding folded in).  One matmul per ky.
        up = jnp.dot(s_up, x2d, preferred_element_type=jnp.float32)   # rows y+1
        dn = jnp.dot(s_dn, x2d, preferred_element_type=jnp.float32)   # rows y-1
        acc = jnp.dot(x2d.astype(jnp.bfloat16), w_ref[1],
                      preferred_element_type=jnp.float32)
        acc = acc + jnp.dot(up.astype(jnp.bfloat16), w_ref[2],
                            preferred_element_type=jnp.float32)
        acc = acc + jnp.dot(dn.astype(jnp.bfloat16), w_ref[0],
                            preferred_element_type=jnp.float32)
        return acc

    def group_norm_gelu(h, gamma, beta):
        # h: (H, W*C_out) f32, lane-dense.  One-pass stats: E[x^2] - mu^2.
        s1 = jnp.sum(h, axis=0, keepdims=True)           # (1, W*C_out)
        s2 = jnp.sum(h * h, axis=0, keepdims=True)       # (1, W*C_out)
        mu = jnp.zeros_like(s1)
        inv = jnp.zeros_like(s1)
        for g in range(groups):
            m = (gid == float(g)).astype(jnp.float32)    # (1, W*C_out)
            mu_g = jnp.sum(s1 * m, keepdims=True) / n_grp            # (1, 1)
            var_g = jnp.sum(s2 * m, keepdims=True) / n_grp - mu_g * mu_g
            mu = mu + mu_g * m
            inv = inv + jax.lax.rsqrt(var_g + eps) * m
        return _gelu_tanh((h - mu) * inv * gamma + beta)

    # stage 1: conv1 + GN1 + GELU
    h = group_norm_gelu(conv3x3(x_ref[0], w1_ref) + b1_ref[...],
                        g1_ref[...], beta1_ref[...])
    # stage 2: conv2 + GN2 + GELU
    out = group_norm_gelu(conv3x3(h, w2_ref) + b2_ref[...],
                          g2_ref[...], beta2_ref[...])
    o_ref[0] = out.astype(o_ref.dtype)


def _make_row_weights(w, width):
    """(C_out, C_in, 3, 3) OIHW -> (3, width*C_in, width*C_out) block-Toeplitz.

    big[ky, xin*C_in + ci, x*C_out + co] = w[co, ci, ky, kx] with xin = x + kx - 1,
    and zero when xin falls outside [0, width) ("same" padding left/right).
    """
    c_out, c_in = w.shape[0], w.shape[1]
    xin = jnp.arange(width)[:, None, None]
    xout = jnp.arange(width)[None, :, None]
    kx = jnp.arange(3)[None, None, :]
    ind = (xin == xout + kx - 1).astype(w.dtype)              # (W, W, 3)
    big = jnp.einsum('abk,oiyk->yaibo', ind, w)               # (3, W, Cin, W, Cout)
    return big.reshape(3, width * c_in, width * c_out)


def conv_block(x, w1, b1, g1, beta1, w2, b2, g2, beta2, *, groups=2, eps=1e-5):
    """ConvBlock forward. x: (B, C_in, H, W) NCHW -> (B, C_out, H, W) NCHW."""
    B, C_in, H, W = x.shape
    C_out = w1.shape[0]
    wc_in, wc_out = W * C_in, W * C_out

    # Wrapper-side layout plumbing (tiny, handled once by XLA outside the kernel).
    x_rows = jnp.transpose(x, (0, 2, 3, 1)).reshape(B, H, wc_in).astype(jnp.float32)
    w1_big = _make_row_weights(w1.astype(jnp.float32), W).astype(jnp.bfloat16)
    w2_big = _make_row_weights(w2.astype(jnp.float32), W).astype(jnp.bfloat16)
    lane_row = lambda v: jnp.tile(v.astype(jnp.float32), W).reshape(1, wc_out)
    gid = jnp.tile(jnp.arange(C_out, dtype=jnp.int32) // (C_out // groups), W)
    gid = gid.astype(jnp.float32).reshape(1, wc_out)

    kernel = functools.partial(_conv_block_kernel, groups=groups, eps=eps)
    rowspec = pl.BlockSpec((1, wc_out), lambda b: (0, 0))

    out = pl.pallas_call(
        kernel,
        out_shape=jax.ShapeDtypeStruct((B, H, wc_out), jnp.float32),
        grid=(B,),
        in_specs=[
            pl.BlockSpec((1, H, wc_in), lambda b: (b, 0, 0)),      # per-sample rows
            rowspec,                                               # per-lane group id
            pl.BlockSpec((3, wc_in, wc_out), lambda b: (0, 0, 0)),  # conv1 weights
            rowspec, rowspec, rowspec,                             # b1, gamma1, beta1
            pl.BlockSpec((3, wc_out, wc_out), lambda b: (0, 0, 0)),  # conv2 weights
            rowspec, rowspec, rowspec,                             # b2, gamma2, beta2
        ],
        out_specs=pl.BlockSpec((1, H, wc_out), lambda b: (b, 0, 0)),
        compiler_params=pltpu.CompilerParams(
            dimension_semantics=("parallel",)),
    )(x_rows, gid, w1_big, lane_row(b1), lane_row(g1), lane_row(beta1),
      w2_big, lane_row(b2), lane_row(g2), lane_row(beta2))

    # (B, H, W*C_out) -> NHWC -> NCHW, matching the PyTorch module's output layout.
    return jnp.transpose(out.reshape(B, H, W, C_out), (0, 3, 1, 2))


def _reference(x, w1, b1, g1, beta1, w2, b2, g2, beta2, *, groups=2, eps=1e-5):
    # Exact f32 reference (HIGHEST precision convs).
    def conv(inp, w, b):
        y = jax.lax.conv_general_dilated(
            inp, w, window_strides=(1, 1), padding=((1, 1), (1, 1)),
            dimension_numbers=("NCHW", "OIHW", "NCHW"),
            precision=jax.lax.Precision.HIGHEST)
        return y + b[None, :, None, None]

    def gn(inp, gamma, beta):
        B, C, H, W = inp.shape
        xg = inp.reshape(B, groups, C // groups, H, W)
        mu = xg.mean(axis=(2, 3, 4), keepdims=True)
        var = jnp.square(xg - mu).mean(axis=(2, 3, 4), keepdims=True)
        xn = ((xg - mu) * jax.lax.rsqrt(var + eps)).reshape(B, C, H, W)
        return xn * gamma[None, :, None, None] + beta[None, :, None, None]

    h = _gelu_tanh(gn(conv(x, w1, b1), g1, beta1))
    return _gelu_tanh(gn(conv(h, w2, b2), g2, beta2))


if __name__ == "__main__":
    B, C_in, C_out, H, W = 2, 4, 8, 16, 16
    keys = jax.random.split(jax.random.PRNGKey(0), 9)

    x = jax.random.normal(keys[0], (B, C_in, H, W), jnp.float32)
    w1 = jax.random.normal(keys[1], (C_out, C_in, 3, 3), jnp.float32) / jnp.sqrt(9.0 * C_in)
    b1 = 0.05 * jax.random.normal(keys[2], (C_out,), jnp.float32)
    g1 = 1.0 + 0.1 * jax.random.normal(keys[3], (C_out,), jnp.float32)
    beta1 = 0.1 * jax.random.normal(keys[4], (C_out,), jnp.float32)
    w2 = jax.random.normal(keys[5], (C_out, C_out, 3, 3), jnp.float32) / jnp.sqrt(9.0 * C_out)
    b2 = 0.05 * jax.random.normal(keys[6], (C_out,), jnp.float32)
    g2 = 1.0 + 0.1 * jax.random.normal(keys[7], (C_out,), jnp.float32)
    beta2 = 0.1 * jax.random.normal(keys[8], (C_out,), jnp.float32)

    out = jax.block_until_ready(conv_block(x, w1, b1, g1, beta1, w2, b2, g2, beta2))
    ref = _reference(x, w1, b1, g1, beta1, w2, b2, g2, beta2)

    assert out.shape == (B, C_out, H, W), out.shape
    # Kernel uses single-pass bf16 MXU matmuls (f32 accumulation) + EUP tanh, the
    # reference is exact f32: allow for bf16 operand rounding through two conv+GN
    # stages while still cleanly catching any real indexing/normalization bug.
    max_err = float(jnp.max(jnp.abs(out - ref)))
    assert max_err < 5e-2, max_err
    print("KERNEL_OK")
</pallas_src>

<mosaic_0001>
module attributes {stable_mosaic.version = 11 : i64} {
  func.func @_conv_block_kernel(%arg0: i32, %arg1: memref<1x16x64xf32, #tpu.memory_space<vmem>>, %arg2: memref<1x128xf32, #tpu.memory_space<vmem>>, %arg3: memref<3x64x128xbf16, #tpu.memory_space<vmem>>, %arg4: memref<1x128xf32, #tpu.memory_space<vmem>>, %arg5: memref<1x128xf32, #tpu.memory_space<vmem>>, %arg6: memref<1x128xf32, #tpu.memory_space<vmem>>, %arg7: memref<3x128x128xbf16, #tpu.memory_space<vmem>>, %arg8: memref<1x128xf32, #tpu.memory_space<vmem>>, %arg9: memref<1x128xf32, #tpu.memory_space<vmem>>, %arg10: memref<1x128xf32, #tpu.memory_space<vmem>>, %arg11: memref<1x16x128xf32, #tpu.memory_space<vmem>>) attributes {dimension_semantics = [#tpu.dimension_semantics<parallel>], iteration_bounds = array<i64: 2>, scalar_prefetch = 0 : i64, scratch_operands = 0 : i64, tpu.core_type = #tpu.core_type<tc>, window_params = [{transform_indices = @transform_0, window_bounds = array<i64: 1, 16, 64>}, {pipeline_mode = #tpu.pipeline_mode<synchronous>, transform_indices = @transform_1, window_bounds = array<i64: 1, 128>}, {pipeline_mode = #tpu.pipeline_mode<synchronous>, transform_indices = @transform_2, window_bounds = array<i64: 3, 64, 128>}, {pipeline_mode = #tpu.pipeline_mode<synchronous>, transform_indices = @transform_3, window_bounds = array<i64: 1, 128>}, {pipeline_mode = #tpu.pipeline_mode<synchronous>, transform_indices = @transform_4, window_bounds = array<i64: 1, 128>}, {pipeline_mode = #tpu.pipeline_mode<synchronous>, transform_indices = @transform_5, window_bounds = array<i64: 1, 128>}, {pipeline_mode = #tpu.pipeline_mode<synchronous>, transform_indices = @transform_6, window_bounds = array<i64: 3, 128, 128>}, {pipeline_mode = #tpu.pipeline_mode<synchronous>, transform_indices = @transform_7, window_bounds = array<i64: 1, 128>}, {pipeline_mode = #tpu.pipeline_mode<synchronous>, transform_indices = @transform_8, window_bounds = array<i64: 1, 128>}, {pipeline_mode = #tpu.pipeline_mode<synchronous>, transform_indices = @transform_9, window_bounds = array<i64: 1, 128>}, {transform_indices = @transform_10, window_bounds = array<i64: 1, 16, 128>}]} {
    %0 = tpu.iota {dimensions = array<i32: 0>} : vector<16x16xi32>
    %1 = tpu.iota {dimensions = array<i32: 1>} : vector<16x16xi32>
    %c1_i32 = arith.constant 1 : i32
    %2 = vector.broadcast %c1_i32 : i32 to vector<16x16xi32>
    %3 = arith.addi %0, %2 : vector<16x16xi32>
    %4 = arith.cmpi eq, %1, %3 : vector<16x16xi32>
    %5 = arith.extui %4 : vector<16x16xi1> to vector<16x16xi32>
    %6 = arith.sitofp %5 : vector<16x16xi32> to vector<16x16xf32>
    %c1_i32_0 = arith.constant 1 : i32
    %7 = vector.broadcast %c1_i32_0 : i32 to vector<16x16xi32>
    %8 = arith.subi %0, %7 : vector<16x16xi32>
    %9 = arith.cmpi eq, %1, %8 : vector<16x16xi32>
    %10 = arith.extui %9 : vector<16x16xi1> to vector<16x16xi32>
    %11 = arith.sitofp %10 : vector<16x16xi32> to vector<16x16xf32>
    %c0 = arith.constant 0 : index
    %c0_1 = arith.constant 0 : index
    %12 = vector.load %arg2[%c0, %c0_1] : memref<1x128xf32, #tpu.memory_space<vmem>>, vector<1x128xf32>
    %c0_2 = arith.constant 0 : index
    %c0_3 = arith.constant 0 : index
    %c0_4 = arith.constant 0 : index
    %13 = vector.load %arg1[%c0_2, %c0_3, %c0_4] : memref<1x16x64xf32, #tpu.memory_space<vmem>>, vector<1x16x64xf32>
    %14 = vector.shape_cast %13 : vector<1x16x64xf32> to vector<16x64xf32>
    %cst = arith.constant dense<0.000000e+00> : vector<16x64xf32>
    %15 = tpu.matmul %6, %14, %cst {dimension_numbers = #tpu.dot_dimension_numbers<[1], [0], [0], [1], [0, 0, 1, 1], [], []>} : vector<16x16xf32>, vector<16x64xf32>, vector<16x64xf32> -> vector<16x64xf32>
    %cst_5 = arith.constant dense<0.000000e+00> : vector<16x64xf32>
    %16 = tpu.matmul %11, %14, %cst_5 {dimension_numbers = #tpu.dot_dimension_numbers<[1], [0], [0], [1], [0, 0, 1, 1], [], []>} : vector<16x16xf32>, vector<16x64xf32>, vector<16x64xf32> -> vector<16x64xf32>
    %17 = arith.truncf %14 : vector<16x64xf32> to vector<16x64xbf16>
    %c1 = arith.constant 1 : index
    %c0_6 = arith.constant 0 : index
    %c0_7 = arith.constant 0 : index
    %18 = vector.load %arg3[%c1, %c0_6, %c0_7] : memref<3x64x128xbf16, #tpu.memory_space<vmem>>, vector<1x64x128xbf16>
    %19 = vector.shape_cast %18 : vector<1x64x128xbf16> to vector<64x128xbf16>
    %cst_8 = arith.constant dense<0.000000e+00> : vector<16x128xf32>
    %20 = tpu.matmul %17, %19, %cst_8 {dimension_numbers = #tpu.dot_dimension_numbers<[1], [0], [0], [1], [0, 0, 1, 1], [], []>} : vector<16x64xbf16>, vector<64x128xbf16>, vector<16x128xf32> -> vector<16x128xf32>
    %21 = arith.truncf %15 : vector<16x64xf32> to vector<16x64xbf16>
    %c2 = arith.constant 2 : index
    %c0_9 = arith.constant 0 : index
    %c0_10 = arith.constant 0 : index
    %22 = vector.load %arg3[%c2, %c0_9, %c0_10] : memref<3x64x128xbf16, #tpu.memory_space<vmem>>, vector<1x64x128xbf16>
    %23 = vector.shape_cast %22 : vector<1x64x128xbf16> to vector<64x128xbf16>
    %cst_11 = arith.constant dense<0.000000e+00> : vector<16x128xf32>
    %24 = tpu.matmul %21, %23, %cst_11 {dimension_numbers = #tpu.dot_dimension_numbers<[1], [0], [0], [1], [0, 0, 1, 1], [], []>} : vector<16x64xbf16>, vector<64x128xbf16>, vector<16x128xf32> -> vector<16x128xf32>
    %25 = arith.addf %20, %24 : vector<16x128xf32>
    %26 = arith.truncf %16 : vector<16x64xf32> to vector<16x64xbf16>
    %c0_12 = arith.constant 0 : index
    %c0_13 = arith.constant 0 : index
    %c0_14 = arith.constant 0 : index
    %27 = vector.load %arg3[%c0_12, %c0_13, %c0_14] : memref<3x64x128xbf16, #tpu.memory_space<vmem>>, vector<1x64x128xbf16>
    %28 = vector.shape_cast %27 : vector<1x64x128xbf16> to vector<64x128xbf16>
    %cst_15 = arith.constant dense<0.000000e+00> : vector<16x128xf32>
    %29 = tpu.matmul %26, %28, %cst_15 {dimension_numbers = #tpu.dot_dimension_numbers<[1], [0], [0], [1], [0, 0, 1, 1], [], []>} : vector<16x64xbf16>, vector<64x128xbf16>, vector<16x128xf32> -> vector<16x128xf32>
    %30 = arith.addf %25, %29 : vector<16x128xf32>
    %c0_16 = arith.constant 0 : index
    %c0_17 = arith.constant 0 : index
    %31 = vector.load %arg4[%c0_16, %c0_17] : memref<1x128xf32, #tpu.memory_space<vmem>>, vector<1x128xf32>
    %32 = vector.broadcast %31 : vector<1x128xf32> to vector<16x128xf32>
    %33 = arith.addf %30, %32 : vector<16x128xf32>
    %c0_18 = arith.constant 0 : index
    %c0_19 = arith.constant 0 : index
    %34 = vector.load %arg5[%c0_18, %c0_19] : memref<1x128xf32, #tpu.memory_space<vmem>>, vector<1x128xf32>
    %c0_20 = arith.constant 0 : index
    %c0_21 = arith.constant 0 : index
    %35 = vector.load %arg6[%c0_20, %c0_21] : memref<1x128xf32, #tpu.memory_space<vmem>>, vector<1x128xf32>
    %cst_22 = arith.constant dense<0.000000e+00> : vector<128xf32>
    %36 = vector.multi_reduction <add>, %33, %cst_22 [0] : vector<16x128xf32> to vector<128xf32>
    %37 = vector.shape_cast %36 : vector<128xf32> to vector<1x128xf32>
    %38 = arith.mulf %33, %33 : vector<16x128xf32>
    %cst_23 = arith.constant dense<0.000000e+00> : vector<128xf32>
    %39 = vector.multi_reduction <add>, %38, %cst_23 [0] : vector<16x128xf32> to vector<128xf32>
    %40 = vector.shape_cast %39 : vector<128xf32> to vector<1x128xf32>
    %cst_24 = arith.constant 0.000000e+00 : f32
    %41 = vector.broadcast %cst_24 : f32 to vector<1x128xf32>
    %cst_25 = arith.constant 0.000000e+00 : f32
    %42 = vector.broadcast %cst_25 : f32 to vector<1x128xf32>
    %cst_26 = arith.constant 0.000000e+00 : f32
    %43 = vector.broadcast %cst_26 : f32 to vector<1x128xf32>
    %44 = arith.cmpf oeq, %12, %43 : vector<1x128xf32>
    %45 = arith.extui %44 : vector<1x128xi1> to vector<1x128xi32>
    %46 = arith.sitofp %45 : vector<1x128xi32> to vector<1x128xf32>
    %47 = arith.mulf %37, %46 : vector<1x128xf32>
    %48 = vector.shape_cast %47 : vector<1x128xf32> to vector<1x1x128xf32>
    %cst_27 = arith.constant dense<0.000000e+00> : vector<1xf32>
    %49 = vector.multi_reduction <add>, %48, %cst_27 [1, 2] : vector<1x1x128xf32> to vector<1xf32>
    %50 = vector.shape_cast %49 : vector<1xf32> to vector<1x1x1xf32>
    %51 = vector.extract %50[0, 0, 0] : f32 from vector<1x1x1xf32>
    %52 = vector.broadcast %51 : f32 to vector<1x1xf32>
    %cst_28 = arith.constant 1.024000e+03 : f32
    %53 = vector.broadcast %cst_28 : f32 to vector<1x1xf32>
    %54 = arith.divf %52, %53 : vector<1x1xf32>
    %55 = arith.mulf %40, %46 : vector<1x128xf32>
    %56 = vector.shape_cast %55 : vector<1x128xf32> to vector<1x1x128xf32>
    %cst_29 = arith.constant dense<0.000000e+00> : vector<1xf32>
    %57 = vector.multi_reduction <add>, %56, %cst_29 [1, 2] : vector<1x1x128xf32> to vector<1xf32>
    %58 = vector.shape_cast %57 : vector<1xf32> to vector<1x1x1xf32>
    %59 = vector.extract %58[0, 0, 0] : f32 from vector<1x1x1xf32>
    %60 = vector.broadcast %59 : f32 to vector<1x1xf32>
    %cst_30 = arith.constant 1.024000e+03 : f32
    %61 = vector.broadcast %cst_30 : f32 to vector<1x1xf32>
    %62 = arith.divf %60, %61 : vector<1x1xf32>
    %63 = arith.mulf %54, %54 : vector<1x1xf32>
    %64 = arith.subf %62, %63 : vector<1x1xf32>
    %65 = vector.broadcast %54 : vector<1x1xf32> to vector<1x128xf32>
    %66 = arith.mulf %65, %46 : vector<1x128xf32>
    %67 = arith.addf %41, %66 : vector<1x128xf32>
    %cst_31 = arith.constant 9.99999974E-6 : f32
    %68 = vector.broadcast %cst_31 : f32 to vector<1x1xf32>
    %69 = arith.addf %64, %68 : vector<1x1xf32>
    %70 = math.rsqrt %69 : vector<1x1xf32>
    %71 = vector.broadcast %70 : vector<1x1xf32> to vector<1x128xf32>
    %72 = arith.mulf %71, %46 : vector<1x128xf32>
    %73 = arith.addf %42, %72 : vector<1x128xf32>
    %cst_32 = arith.constant 1.000000e+00 : f32
    %74 = vector.broadcast %cst_32 : f32 to vector<1x128xf32>
    %75 = arith.cmpf oeq, %12, %74 : vector<1x128xf32>
    %76 = arith.extui %75 : vector<1x128xi1> to vector<1x128xi32>
    %77 = arith.sitofp %76 : vector<1x128xi32> to vector<1x128xf32>
    %78 = arith.mulf %37, %77 : vector<1x128xf32>
    %79 = vector.shape_cast %78 : vector<1x128xf32> to vector<1x1x128xf32>
    %cst_33 = arith.constant dense<0.000000e+00> : vector<1xf32>
    %80 = vector.multi_reduction <add>, %79, %cst_33 [1, 2] : vector<1x1x128xf32> to vector<1xf32>
    %81 = vector.shape_cast %80 : vector<1xf32> to vector<1x1x1xf32>
    %82 = vector.extract %81[0, 0, 0] : f32 from vector<1x1x1xf32>
    %83 = vector.broadcast %82 : f32 to vector<1x1xf32>
    %cst_34 = arith.constant 1.024000e+03 : f32
    %84 = vector.broadcast %cst_34 : f32 to vector<1x1xf32>
    %85 = arith.divf %83, %84 : vector<1x1xf32>
    %86 = arith.mulf %40, %77 : vector<1x128xf32>
    %87 = vector.shape_cast %86 : vector<1x128xf32> to vector<1x1x128xf32>
    %cst_35 = arith.constant dense<0.000000e+00> : vector<1xf32>
    %88 = vector.multi_reduction <add>, %87, %cst_35 [1, 2] : vector<1x1x128xf32> to vector<1xf32>
    %89 = vector.shape_cast %88 : vector<1xf32> to vector<1x1x1xf32>
    %90 = vector.extract %89[0, 0, 0] : f32 from vector<1x1x1xf32>
    %91 = vector.broadcast %90 : f32 to vector<1x1xf32>
    %cst_36 = arith.constant 1.024000e+03 : f32
    %92 = vector.broadcast %cst_36 : f32 to vector<1x1xf32>
    %93 = arith.divf %91, %92 : vector<1x1xf32>
    %94 = arith.mulf %85, %85 : vector<1x1xf32>
    %95 = arith.subf %93, %94 : vector<1x1xf32>
    %96 = vector.broadcast %85 : vector<1x1xf32> to vector<1x128xf32>
    %97 = arith.mulf %96, %77 : vector<1x128xf32>
    %98 = arith.addf %67, %97 : vector<1x128xf32>
    %cst_37 = arith.constant 9.99999974E-6 : f32
    %99 = vector.broadcast %cst_37 : f32 to vector<1x1xf32>
    %100 = arith.addf %95, %99 : vector<1x1xf32>
    %101 = math.rsqrt %100 : vector<1x1xf32>
    %102 = vector.broadcast %101 : vector<1x1xf32> to vector<1x128xf32>
    %103 = arith.mulf %102, %77 : vector<1x128xf32>
    %104 = arith.addf %73, %103 : vector<1x128xf32>
    %105 = vector.broadcast %98 : vector<1x128xf32> to vector<16x128xf32>
    %106 = arith.subf %33, %105 : vector<16x128xf32>
    %107 = vector.broadcast %104 : vector<1x128xf32> to vector<16x128xf32>
    %108 = arith.mulf %106, %107 : vector<16x128xf32>
    %109 = vector.broadcast %34 : vector<1x128xf32> to vector<16x128xf32>
    %110 = arith.mulf %108, %109 : vector<16x128xf32>
    %111 = vector.broadcast %35 : vector<1x128xf32> to vector<16x128xf32>
    %112 = arith.addf %110, %111 : vector<16x128xf32>
    %cst_38 = arith.constant 5.000000e-01 : f32
    %113 = vector.broadcast %cst_38 : f32 to vector<16x128xf32>
    %114 = arith.mulf %113, %112 : vector<16x128xf32>
    %cst_39 = arith.constant 4.471500e-02 : f32
    %115 = vector.broadcast %cst_39 : f32 to vector<16x128xf32>
    %116 = arith.mulf %115, %112 : vector<16x128xf32>
    %117 = arith.mulf %116, %112 : vector<16x128xf32>
    %118 = arith.mulf %117, %112 : vector<16x128xf32>
    %119 = arith.addf %112, %118 : vector<16x128xf32>
    %cst_40 = arith.constant 0.797884583 : f32
    %120 = vector.broadcast %cst_40 : f32 to vector<16x128xf32>
    %121 = arith.mulf %120, %119 : vector<16x128xf32>
    %122 = math.tanh %121 : vector<16x128xf32>
    %cst_41 = arith.constant 1.000000e+00 : f32
    %123 = vector.broadcast %cst_41 : f32 to vector<16x128xf32>
    %124 = arith.addf %123, %122 : vector<16x128xf32>
    %125 = arith.mulf %114, %124 : vector<16x128xf32>
    %cst_42 = arith.constant dense<0.000000e+00> : vector<16x128xf32>
    %126 = tpu.matmul %6, %125, %cst_42 {dimension_numbers = #tpu.dot_dimension_numbers<[1], [0], [0], [1], [0, 0, 1, 1], [], []>} : vector<16x16xf32>, vector<16x128xf32>, vector<16x128xf32> -> vector<16x128xf32>
    %cst_43 = arith.constant dense<0.000000e+00> : vector<16x128xf32>
    %127 = tpu.matmul %11, %125, %cst_43 {dimension_numbers = #tpu.dot_dimension_numbers<[1], [0], [0], [1], [0, 0, 1, 1], [], []>} : vector<16x16xf32>, vector<16x128xf32>, vector<16x128xf32> -> vector<16x128xf32>
    %128 = arith.truncf %125 : vector<16x128xf32> to vector<16x128xbf16>
    %c1_44 = arith.constant 1 : index
    %c0_45 = arith.constant 0 : index
    %c0_46 = arith.constant 0 : index
    %129 = vector.load %arg7[%c1_44, %c0_45, %c0_46] : memref<3x128x128xbf16, #tpu.memory_space<vmem>>, vector<1x128x128xbf16>
    %130 = vector.shape_cast %129 : vector<1x128x128xbf16> to vector<128x128xbf16>
    %cst_47 = arith.constant dense<0.000000e+00> : vector<16x128xf32>
    %131 = tpu.matmul %128, %130, %cst_47 {dimension_numbers = #tpu.dot_dimension_numbers<[1], [0], [0], [1], [0, 0, 1, 1], [], []>} : vector<16x128xbf16>, vector<128x128xbf16>, vector<16x128xf32> -> vector<16x128xf32>
    %132 = arith.truncf %126 : vector<16x128xf32> to vector<16x128xbf16>
    %c2_48 = arith.constant 2 : index
    %c0_49 = arith.constant 0 : index
    %c0_50 = arith.constant 0 : index
    %133 = vector.load %arg7[%c2_48, %c0_49, %c0_50] : memref<3x128x128xbf16, #tpu.memory_space<vmem>>, vector<1x128x128xbf16>
    %134 = vector.shape_cast %133 : vector<1x128x128xbf16> to vector<128x128xbf16>
    %cst_51 = arith.constant dense<0.000000e+00> : vector<16x128xf32>
    %135 = tpu.matmul %132, %134, %cst_51 {dimension_numbers = #tpu.dot_dimension_numbers<[1], [0], [0], [1], [0, 0, 1, 1], [], []>} : vector<16x128xbf16>, vector<128x128xbf16>, vector<16x128xf32> -> vector<16x128xf32>
    %136 = arith.addf %131, %135 : vector<16x128xf32>
    %137 = arith.truncf %127 : vector<16x128xf32> to vector<16x128xbf16>
    %c0_52 = arith.constant 0 : index
    %c0_53 = arith.constant 0 : index
    %c0_54 = arith.constant 0 : index
    %138 = vector.load %arg7[%c0_52, %c0_53, %c0_54] : memref<3x128x128xbf16, #tpu.memory_space<vmem>>, vector<1x128x128xbf16>
    %139 = vector.shape_cast %138 : vector<1x128x128xbf16> to vector<128x128xbf16>
    %cst_55 = arith.constant dense<0.000000e+00> : vector<16x128xf32>
    %140 = tpu.matmul %137, %139, %cst_55 {dimension_numbers = #tpu.dot_dimension_numbers<[1], [0], [0], [1], [0, 0, 1, 1], [], []>} : vector<16x128xbf16>, vector<128x128xbf16>, vector<16x128xf32> -> vector<16x128xf32>
    %141 = arith.addf %136, %140 : vector<16x128xf32>
    %c0_56 = arith.constant 0 : index
    %c0_57 = arith.constant 0 : index
    %142 = vector.load %arg8[%c0_56, %c0_57] : memref<1x128xf32, #tpu.memory_space<vmem>>, vector<1x128xf32>
    %143 = vector.broadcast %142 : vector<1x128xf32> to vector<16x128xf32>
    %144 = arith.addf %141, %143 : vector<16x128xf32>
    %c0_58 = arith.constant 0 : index
    %c0_59 = arith.constant 0 : index
    %145 = vector.load %arg9[%c0_58, %c0_59] : memref<1x128xf32, #tpu.memory_space<vmem>>, vector<1x128xf32>
    %c0_60 = arith.constant 0 : index
    %c0_61 = arith.constant 0 : index
    %146 = vector.load %arg10[%c0_60, %c0_61] : memref<1x128xf32, #tpu.memory_space<vmem>>, vector<1x128xf32>
    %cst_62 = arith.constant dense<0.000000e+00> : vector<128xf32>
    %147 = vector.multi_reduction <add>, %144, %cst_62 [0] : vector<16x128xf32> to vector<128xf32>
    %148 = vector.shape_cast %147 : vector<128xf32> to vector<1x128xf32>
    %149 = arith.mulf %144, %144 : vector<16x128xf32>
    %cst_63 = arith.constant dense<0.000000e+00> : vector<128xf32>
    %150 = vector.multi_reduction <add>, %149, %cst_63 [0] : vector<16x128xf32> to vector<128xf32>
    %151 = vector.shape_cast %150 : vector<128xf32> to vector<1x128xf32>
    %cst_64 = arith.constant 0.000000e+00 : f32
    %152 = vector.broadcast %cst_64 : f32 to vector<1x128xf32>
    %cst_65 = arith.constant 0.000000e+00 : f32
    %153 = vector.broadcast %cst_65 : f32 to vector<1x128xf32>
    %cst_66 = arith.constant 0.000000e+00 : f32
    %154 = vector.broadcast %cst_66 : f32 to vector<1x128xf32>
    %155 = arith.cmpf oeq, %12, %154 : vector<1x128xf32>
    %156 = arith.extui %155 : vector<1x128xi1> to vector<1x128xi32>
    %157 = arith.sitofp %156 : vector<1x128xi32> to vector<1x128xf32>
    %158 = arith.mulf %148, %157 : vector<1x128xf32>
    %159 = vector.shape_cast %158 : vector<1x128xf32> to vector<1x1x128xf32>
    %cst_67 = arith.constant dense<0.000000e+00> : vector<1xf32>
    %160 = vector.multi_reduction <add>, %159, %cst_67 [1, 2] : vector<1x1x128xf32> to vector<1xf32>
    %161 = vector.shape_cast %160 : vector<1xf32> to vector<1x1x1xf32>
    %162 = vector.extract %161[0, 0, 0] : f32 from vector<1x1x1xf32>
    %163 = vector.broadcast %162 : f32 to vector<1x1xf32>
    %cst_68 = arith.constant 1.024000e+03 : f32
    %164 = vector.broadcast %cst_68 : f32 to vector<1x1xf32>
    %165 = arith.divf %163, %164 : vector<1x1xf32>
    %166 = arith.mulf %151, %157 : vector<1x128xf32>
    %167 = vector.shape_cast %166 : vector<1x128xf32> to vector<1x1x128xf32>
    %cst_69 = arith.constant dense<0.000000e+00> : vector<1xf32>
    %168 = vector.multi_reduction <add>, %167, %cst_69 [1, 2] : vector<1x1x128xf32> to vector<1xf32>
    %169 = vector.shape_cast %168 : vector<1xf32> to vector<1x1x1xf32>
    %170 = vector.extract %169[0, 0, 0] : f32 from vector<1x1x1xf32>
    %171 = vector.broadcast %170 : f32 to vector<1x1xf32>
    %cst_70 = arith.constant 1.024000e+03 : f32
    %172 = vector.broadcast %cst_70 : f32 to vector<1x1xf32>
    %173 = arith.divf %171, %172 : vector<1x1xf32>
    %174 = arith.mulf %165, %165 : vector<1x1xf32>
    %175 = arith.subf %173, %174 : vector<1x1xf32>
    %176 = vector.broadcast %165 : vector<1x1xf32> to vector<1x128xf32>
    %177 = arith.mulf %176, %157 : vector<1x128xf32>
    %178 = arith.addf %152, %177 : vector<1x128xf32>
    %cst_71 = arith.constant 9.99999974E-6 : f32
    %179 = vector.broadcast %cst_71 : f32 to vector<1x1xf32>
    %180 = arith.addf %175, %179 : vector<1x1xf32>
    %181 = math.rsqrt %180 : vector<1x1xf32>
    %182 = vector.broadcast %181 : vector<1x1xf32> to vector<1x128xf32>
    %183 = arith.mulf %182, %157 : vector<1x128xf32>
    %184 = arith.addf %153, %183 : vector<1x128xf32>
    %cst_72 = arith.constant 1.000000e+00 : f32
    %185 = vector.broadcast %cst_72 : f32 to vector<1x128xf32>
    %186 = arith.cmpf oeq, %12, %185 : vector<1x128xf32>
    %187 = arith.extui %186 : vector<1x128xi1> to vector<1x128xi32>
    %188 = arith.sitofp %187 : vector<1x128xi32> to vector<1x128xf32>
    %189 = arith.mulf %148, %188 : vector<1x128xf32>
    %190 = vector.shape_cast %189 : vector<1x128xf32> to vector<1x1x128xf32>
    %cst_73 = arith.constant dense<0.000000e+00> : vector<1xf32>
    %191 = vector.multi_reduction <add>, %190, %cst_73 [1, 2] : vector<1x1x128xf32> to vector<1xf32>
    %192 = vector.shape_cast %191 : vector<1xf32> to vector<1x1x1xf32>
    %193 = vector.extract %192[0, 0, 0] : f32 from vector<1x1x1xf32>
    %194 = vector.broadcast %193 : f32 to vector<1x1xf32>
    %cst_74 = arith.constant 1.024000e+03 : f32
    %195 = vector.broadcast %cst_74 : f32 to vector<1x1xf32>
    %196 = arith.divf %194, %195 : vector<1x1xf32>
    %197 = arith.mulf %151, %188 : vector<1x128xf32>
    %198 = vector.shape_cast %197 : vector<1x128xf32> to vector<1x1x128xf32>
    %cst_75 = arith.constant dense<0.000000e+00> : vector<1xf32>
    %199 = vector.multi_reduction <add>, %198, %cst_75 [1, 2] : vector<1x1x128xf32> to vector<1xf32>
    %200 = vector.shape_cast %199 : vector<1xf32> to vector<1x1x1xf32>
    %201 = vector.extract %200[0, 0, 0] : f32 from vector<1x1x1xf32>
    %202 = vector.broadcast %201 : f32 to vector<1x1xf32>
    %cst_76 = arith.constant 1.024000e+03 : f32
    %203 = vector.broadcast %cst_76 : f32 to vector<1x1xf32>
    %204 = arith.divf %202, %203 : vector<1x1xf32>
    %205 = arith.mulf %196, %196 : vector<1x1xf32>
    %206 = arith.subf %204, %205 : vector<1x1xf32>
    %207 = vector.broadcast %196 : vector<1x1xf32> to vector<1x128xf32>
    %208 = arith.mulf %207, %188 : vector<1x128xf32>
    %209 = arith.addf %178, %208 : vector<1x128xf32>
    %cst_77 = arith.constant 9.99999974E-6 : f32
    %210 = vector.broadcast %cst_77 : f32 to vector<1x1xf32>
    %211 = arith.addf %206, %210 : vector<1x1xf32>
    %212 = math.rsqrt %211 : vector<1x1xf32>
    %213 = vector.broadcast %212 : vector<1x1xf32> to vector<1x128xf32>
    %214 = arith.mulf %213, %188 : vector<1x128xf32>
    %215 = arith.addf %184, %214 : vector<1x128xf32>
    %216 = vector.broadcast %209 : vector<1x128xf32> to vector<16x128xf32>
    %217 = arith.subf %144, %216 : vector<16x128xf32>
    %218 = vector.broadcast %215 : vector<1x128xf32> to vector<16x128xf32>
    %219 = arith.mulf %217, %218 : vector<16x128xf32>
    %220 = vector.broadcast %145 : vector<1x128xf32> to vector<16x128xf32>
    %221 = arith.mulf %219, %220 : vector<16x128xf32>
    %222 = vector.broadcast %146 : vector<1x128xf32> to vector<16x128xf32>
    %223 = arith.addf %221, %222 : vector<16x128xf32>
    %cst_78 = arith.constant 5.000000e-01 : f32
    %224 = vector.broadcast %cst_78 : f32 to vector<16x128xf32>
    %225 = arith.mulf %224, %223 : vector<16x128xf32>
    %cst_79 = arith.constant 4.471500e-02 : f32
    %226 = vector.broadcast %cst_79 : f32 to vector<16x128xf32>
    %227 = arith.mulf %226, %223 : vector<16x128xf32>
    %228 = arith.mulf %227, %223 : vector<16x128xf32>
    %229 = arith.mulf %228, %223 : vector<16x128xf32>
    %230 = arith.addf %223, %229 : vector<16x128xf32>
    %cst_80 = arith.constant 0.797884583 : f32
    %231 = vector.broadcast %cst_80 : f32 to vector<16x128xf32>
    %232 = arith.mulf %231, %230 : vector<16x128xf32>
    %233 = math.tanh %232 : vector<16x128xf32>
    %cst_81 = arith.constant 1.000000e+00 : f32
    %234 = vector.broadcast %cst_81 : f32 to vector<16x128xf32>
    %235 = arith.addf %234, %233 : vector<16x128xf32>
    %236 = arith.mulf %225, %235 : vector<16x128xf32>
    %c0_82 = arith.constant 0 : index
    %c0_83 = arith.constant 0 : index
    %c0_84 = arith.constant 0 : index
    %237 = vector.load %arg11[%c0_82, %c0_83, %c0_84] : memref<1x16x128xf32, #tpu.memory_space<vmem>>, vector<1x16x128xf32>
    %238 = vector.shape_cast %237 : vector<1x16x128xf32> to vector<16x128xf32>
    %239 = vector.shape_cast %236 : vector<16x128xf32> to vector<1x16x128xf32>
    tpu.vector_store %arg11[%c0_82, %c0_83, %c0_84], %239 {strides = array<i32>} : memref<1x16x128xf32, #tpu.memory_space<vmem>>, vector<1x16x128xf32>,
    return
  }
  func.func @transform_0(%arg0: i32) -> (i32, i32, i32) {
    %c0_i32 = arith.constant 0 : i32
    %c0_i32_0 = arith.constant 0 : i32
    %c0_i32_1 = arith.constant 0 : i32
    return %arg0, %c0_i32, %c0_i32_0 : i32, i32, i32
  }
  func.func @transform_1(%arg0: i32) -> (i32, i32) {
    %c0_i32 = arith.constant 0 : i32
    %c0_i32_0 = arith.constant 0 : i32
    %c0_i32_1 = arith.constant 0 : i32
    return %c0_i32, %c0_i32_0 : i32, i32
  }
  func.func @transform_2(%arg0: i32) -> (i32, i32, i32) {
    %c0_i32 = arith.constant 0 : i32
    %c0_i32_0 = arith.constant 0 : i32
    %c0_i32_1 = arith.constant 0 : i32
    %c0_i32_2 = arith.constant 0 : i32
    return %c0_i32, %c0_i32_0, %c0_i32_1 : i32, i32, i32
  }
  func.func @transform_3(%arg0: i32) -> (i32, i32) {
    %c0_i32 = arith.constant 0 : i32
    %c0_i32_0 = arith.constant 0 : i32
    %c0_i32_1 = arith.constant 0 : i32
    return %c0_i32, %c0_i32_0 : i32, i32
  }
  func.func @transform_4(%arg0: i32) -> (i32, i32) {
    %c0_i32 = arith.constant 0 : i32
    %c0_i32_0 = arith.constant 0 : i32
    %c0_i32_1 = arith.constant 0 : i32
    return %c0_i32, %c0_i32_0 : i32, i32
  }
  func.func @transform_5(%arg0: i32) -> (i32, i32) {
    %c0_i32 = arith.constant 0 : i32
    %c0_i32_0 = arith.constant 0 : i32
    %c0_i32_1 = arith.constant 0 : i32
    return %c0_i32, %c0_i32_0 : i32, i32
  }
  func.func @transform_6(%arg0: i32) -> (i32, i32, i32) {
    %c0_i32 = arith.constant 0 : i32
    %c0_i32_0 = arith.constant 0 : i32
    %c0_i32_1 = arith.constant 0 : i32
    %c0_i32_2 = arith.constant 0 : i32
    return %c0_i32, %c0_i32_0, %c0_i32_1 : i32, i32, i32
  }
  func.func @transform_7(%arg0: i32) -> (i32, i32) {
    %c0_i32 = arith.constant 0 : i32
    %c0_i32_0 = arith.constant 0 : i32
    %c0_i32_1 = arith.constant 0 : i32
    return %c0_i32, %c0_i32_0 : i32, i32
  }
  func.func @transform_8(%arg0: i32) -> (i32, i32) {
    %c0_i32 = arith.constant 0 : i32
    %c0_i32_0 = arith.constant 0 : i32
    %c0_i32_1 = arith.constant 0 : i32
    return %c0_i32, %c0_i32_0 : i32, i32
  }
  func.func @transform_9(%arg0: i32) -> (i32, i32) {
    %c0_i32 = arith.constant 0 : i32
    %c0_i32_0 = arith.constant 0 : i32
    %c0_i32_1 = arith.constant 0 : i32
    return %c0_i32, %c0_i32_0 : i32, i32
  }
  func.func @transform_10(%arg0: i32) -> (i32, i32, i32) {
    %c0_i32 = arith.constant 0 : i32
    %c0_i32_0 = arith.constant 0 : i32
    %c0_i32_1 = arith.constant 0 : i32
    return %arg0, %c0_i32, %c0_i32_0 : i32, i32, i32
  }
}

</mosaic_0001>

<llo_original>
// kernel: tpu_custom_call.1
$region0: #{tpu_custom_call.1}
  #allocation0 [shape = 'u32[]', space=smem, size = 0x4, offset = 0x4, fixed_abs, tag = 'smem constant byte address 0x4 - core index']
  #allocation1 [shape = 'u32[144,128]{1,0:T(1,128)}', space=vmem, size = 0x12000, scoped, tag = 'internal scratch']
  %s0 = inlined_call_operand.hbm [shape: f32[2,16,64], index: 0, kind: input, shape index: {}]
  %s1 = inlined_call_operand.vmem [shape: f32[1,128], index: 1, kind: input, shape index: {}]
  %s2 = inlined_call_operand.hbm [shape: bf16[3,64,128], index: 2, kind: input, shape index: {}]
  %s3 = inlined_call_operand.vmem [shape: f32[1,128], index: 3, kind: input, shape index: {}]
  %s4 = inlined_call_operand.vmem [shape: f32[1,128], index: 4, kind: input, shape index: {}]
  %s5 = inlined_call_operand.vmem [shape: f32[1,128], index: 5, kind: input, shape index: {}]
  %s6 = inlined_call_operand.hbm [shape: bf16[3,128,128], index: 6, kind: input, shape index: {}]
  %s7 = inlined_call_operand.vmem [shape: f32[1,128], index: 7, kind: input, shape index: {}]
  %s8 = inlined_call_operand.vmem [shape: f32[1,128], index: 8, kind: input, shape index: {}]
  %s9 = inlined_call_operand.vmem [shape: f32[1,128], index: 9, kind: input, shape index: {}]
  %s10 = inlined_call_operand.hbm [shape: f32[2,16,128], index: 10, kind: output, shape index: {}]
  %s11 = sld [smem:[#allocation0]]
  $region85: #{tpu_custom_call.1} parent=0
    _
  %s13 = ssub.s32 1, %s11
  %s14 = scalar_select 0, %s13, %s11
  $region1: #{tpu_custom_call.1} parent=0
    #allocation2 [shape = 'u8[16384]{0}', space=vmem, size = 0x4000, scoped, tag = 'input window, operand 0']
    #allocation3 [shape = 's32[2]{0}', space=sflag, size = 0x8, scoped, tag = 'scoped memory for tpu_custom_call.1']
    #allocation4 [shape = 's32[2]{0}', space=sflag, size = 0x8, scoped, tag = 'scoped memory for tpu_custom_call.1']
    #allocation5 [shape = 'u8[49152]{0}', space=vmem, size = 0xc000, scoped, tag = 'input window, operand 2, single buffered']
    #allocation6 [shape = 's32[1]{0}', space=sflag, size = 0x4, scoped, tag = 'scoped memory for tpu_custom_call.1']
    #allocation7 [shape = 'u8[98304]{0}', space=vmem, size = 0x18000, scoped, tag = 'input window, operand 6, single buffered']
    #allocation8 [shape = 'u8[16384]{0}', space=vmem, size = 0x4000, scoped, tag = 'output window, operand 0']
    %15 = vsyncpa [#allocation3], 0
    %s16 = scalar_lea.sflag [#allocation3], 1
    %17 = vsyncpa %s16, 0
    %18 = vsyncpa [#allocation6], 0
    %19 = vsyncpa [#allocation4], 0
    %s20 = scalar_lea.sflag [#allocation4], 1
    %21 = vsyncpa %s20, 0
    loop: start=0, step=1, limit=4
    $region2: #{tpu_custom_call.1} parent=1 // loop_pre_header
      _
    $region3: #{tpu_custom_call.1} parent=1 // loop_header
      %s23 = sphi 0, %s27
      %p24 = scmp.ge.s32.totalorder %s23, 4
      %s33 = sphi 0, %s35
      %s36 = sphi 0, %s33
      %s37 = sphi 0, %s36
      %s53 = sphi 0, %s37
      %s57 = sphi 0, %s57
      %s59 = sphi 0, %s57
      %s60 = sphi 0, %s59
      %s74 = sphi 0, %s60
      %s78 = sphi 0, %s78
      %s80 = sphi 0, %s78
      %s81 = sphi 0, %s80
      %s95 = sphi 0, %s81
      %s99 = sphi 0, %s99
      %s101 = sphi 0, %s99
      %s102 = sphi 0, %s101
      %s116 = sphi 0, %s102
      %s120 = sphi 0, %s120
      %s122 = sphi 0, %s120
      %s123 = sphi 0, %s122
      %s137 = sphi 0, %s123
      %s141 = sphi 0, %s141
      %s143 = sphi 0, %s141
      %s144 = sphi 0, %s143
      %s158 = sphi 0, %s144
      %s162 = sphi 0, %s162
      %s164 = sphi 0, %s162
      %s165 = sphi 0, %s164
      %s179 = sphi 0, %s165
      %s183 = sphi 0, %s183
      %s185 = sphi 0, %s183
      %s186 = sphi 0, %s185
      %s200 = sphi 0, %s186
      %s204 = sphi 0, %s204
      %s206 = sphi 0, %s204
      %s207 = sphi 0, %s206
      %s221 = sphi 0, %s207
      %s225 = sphi 0, %s225
      %s227 = sphi 0, %s225
      %s228 = sphi 0, %s227
      %s242 = sphi 0, %s228
      %s248 = sphi 0, %s250
      %s251 = sphi 0, %s248
      %s252 = sphi 0, %s251
      %s268 = sphi 0, %s252
    $region4: #{tpu_custom_call.1} parent=1 // loop_header_branch
      %26 = sbr.rel (%p24) target = $region8
    $region5: #{tpu_custom_call.1} parent=1 // loop_body
      %s28 = ssub.s32 %s23, 1
      %s29 = ssub.s32 %s23, 2
      %s30 = sadd.s32 %s23, 1
      %s31 = ssub.s32 %s23, %s30
      %p32 = scmp.eq.s32.totalorder %s31, 0
      %s34 = sadd.s32 %s33, 1
      %s35 = scalar_select %p32, %s33, %s34
      %p38 = pneg %p32
      %p39 = scmp.eq.s32.totalorder %s23, 1
      %p40 = por %p38, %p39
      %p41 = scmp.ne.s32.totalorder %s33, %s36
      %p42 = scmp.eq.s32.totalorder %s23, 0
      %p43 = por %p41, %p42
      %p44 = scmp.ne.s32.totalorder %s33, %s36
      %p45 = scmp.eq.s32.totalorder %s28, 1
      %p46 = por %p44, %p45
      %p47 = scmp.ne.s32.totalorder %s36, %s37
      %p48 = scmp.eq.s32.totalorder %s28, 0
      %p49 = por %p47, %p48
      %p50 = scmp.ne.s32.totalorder %s36, %s37
      %p51 = scmp.eq.s32.totalorder %s29, 1
      %p52 = por %p50, %p51
      %p54 = scmp.ne.s32.totalorder %s37, %s53
      %p55 = scmp.eq.s32.totalorder %s29, 0
      %p56 = por %p54, %p55
      %s58 = sadd.s32 %s57, 1
      %p61 = scmp.eq.s32.totalorder %s23, 1
      %p62 = scmp.ne.s32.totalorder %s57, %s59
      %p63 = scmp.eq.s32.totalorder %s23, 0
      %p64 = por %p62, %p63
      %p65 = scmp.ne.s32.totalorder %s57, %s59
      %p66 = scmp.eq.s32.totalorder %s28, 1
      %p67 = por %p65, %p66
      %p68 = scmp.ne.s32.totalorder %s59, %s60
      %p69 = scmp.eq.s32.totalorder %s28, 0
      %p70 = por %p68, %p69
      %p71 = scmp.ne.s32.totalorder %s59, %s60
      %p72 = scmp.eq.s32.totalorder %s29, 1
      %p73 = por %p71, %p72
      %p75 = scmp.ne.s32.totalorder %s60, %s74
      %p76 = scmp.eq.s32.totalorder %s29, 0
      %p77 = por %p75, %p76
      %s79 = sadd.s32 %s78, 1
      %p82 = scmp.eq.s32.totalorder %s23, 1
      %p83 = scmp.ne.s32.totalorder %s78, %s80
      %p84 = scmp.eq.s32.totalorder %s23, 0
      %p85 = por %p83, %p84
      %p86 = scmp.ne.s32.totalorder %s78, %s80
      %p87 = scmp.eq.s32.totalorder %s28, 1
      %p88 = por %p86, %p87
      %p89 = scmp.ne.s32.totalorder %s80, %s81
      %p90 = scmp.eq.s32.totalorder %s28, 0
      %p91 = por %p89, %p90
      %p92 = scmp.ne.s32.totalorder %s80, %s81
      %p93 = scmp.eq.s32.totalorder %s29, 1
      %p94 = por %p92, %p93
      %p96 = scmp.ne.s32.totalorder %s81, %s95
      %p97 = scmp.eq.s32.totalorder %s29, 0
      %p98 = por %p96, %p97
      %s100 = sadd.s32 %s99, 1
      %p103 = scmp.eq.s32.totalorder %s23, 1
      %p104 = scmp.ne.s32.totalorder %s99, %s101
      %p105 = scmp.eq.s32.totalorder %s23, 0
      %p106 = por %p104, %p105
      %p107 = scmp.ne.s32.totalorder %s99, %s101
      %p108 = scmp.eq.s32.totalorder %s28, 1
      %p109 = por %p107, %p108
      %p110 = scmp.ne.s32.totalorder %s101, %s102
      %p111 = scmp.eq.s32.totalorder %s28, 0
      %p112 = por %p110, %p111
      %p113 = scmp.ne.s32.totalorder %s101, %s102
      %p114 = scmp.eq.s32.totalorder %s29, 1
      %p115 = por %p113, %p114
      %p117 = scmp.ne.s32.totalorder %s102, %s116
      %p118 = scmp.eq.s32.totalorder %s29, 0
      %p119 = por %p117, %p118
      %s121 = sadd.s32 %s120, 1
      %p124 = scmp.eq.s32.totalorder %s23, 1
      %p125 = scmp.ne.s32.totalorder %s120, %s122
      %p126 = scmp.eq.s32.totalorder %s23, 0
      %p127 = por %p125, %p126
      %p128 = scmp.ne.s32.totalorder %s120, %s122
      %p129 = scmp.eq.s32.totalorder %s28, 1
      %p130 = por %p128, %p129
      %p131 = scmp.ne.s32.totalorder %s122, %s123
      %p132 = scmp.eq.s32.totalorder %s28, 0
      %p133 = por %p131, %p132
      %p134 = scmp.ne.s32.totalorder %s122, %s123
      %p135 = scmp.eq.s32.totalorder %s29, 1
      %p136 = por %p134, %p135
      %p138 = scmp.ne.s32.totalorder %s123, %s137
      %p139 = scmp.eq.s32.totalorder %s29, 0
      %p140 = por %p138, %p139
      %s142 = sadd.s32 %s141, 1
      %p145 = scmp.eq.s32.totalorder %s23, 1
      %p146 = scmp.ne.s32.totalorder %s141, %s143
      %p147 = scmp.eq.s32.totalorder %s23, 0
      %p148 = por %p146, %p147
      %p149 = scmp.ne.s32.totalorder %s141, %s143
      %p150 = scmp.eq.s32.totalorder %s28, 1
      %p151 = por %p149, %p150
      %p152 = scmp.ne.s32.totalorder %s143, %s144
      %p153 = scmp.eq.s32.totalorder %s28, 0
      %p154 = por %p152, %p153
      %p155 = scmp.ne.s32.totalorder %s143, %s144
      %p156 = scmp.eq.s32.totalorder %s29, 1
      %p157 = por %p155, %p156
      %p159 = scmp.ne.s32.totalorder %s144, %s158
      %p160 = scmp.eq.s32.totalorder %s29, 0
      %p161 = por %p159, %p160
      %s163 = sadd.s32 %s162, 1
      %p166 = scmp.eq.s32.totalorder %s23, 1
      %p167 = scmp.ne.s32.totalorder %s162, %s164
      %p168 = scmp.eq.s32.totalorder %s23, 0
      %p169 = por %p167, %p168
      %p170 = scmp.ne.s32.totalorder %s162, %s164
      %p171 = scmp.eq.s32.totalorder %s28, 1
      %p172 = por %p170, %p171
      %p173 = scmp.ne.s32.totalorder %s164, %s165
      %p174 = scmp.eq.s32.totalorder %s28, 0
      %p175 = por %p173, %p174
      %p176 = scmp.ne.s32.totalorder %s164, %s165
      %p177 = scmp.eq.s32.totalorder %s29, 1
      %p178 = por %p176, %p177
      %p180 = scmp.ne.s32.totalorder %s165, %s179
      %p181 = scmp.eq.s32.totalorder %s29, 0
      %p182 = por %p180, %p181
      %s184 = sadd.s32 %s183, 1
      %p187 = scmp.eq.s32.totalorder %s23, 1
      %p188 = scmp.ne.s32.totalorder %s183, %s185
      %p189 = scmp.eq.s32.totalorder %s23, 0
      %p190 = por %p188, %p189
      %p191 = scmp.ne.s32.totalorder %s183, %s185
      %p192 = scmp.eq.s32.totalorder %s28, 1
      %p193 = por %p191, %p192
      %p194 = scmp.ne.s32.totalorder %s185, %s186
      %p195 = scmp.eq.s32.totalorder %s28, 0
      %p196 = por %p194, %p195
      %p197 = scmp.ne.s32.totalorder %s185, %s186
      %p198 = scmp.eq.s32.totalorder %s29, 1
      %p199 = por %p197, %p198
      %p201 = scmp.ne.s32.totalorder %s186, %s200
      %p202 = scmp.eq.s32.totalorder %s29, 0
      %p203 = por %p201, %p202
      %s205 = sadd.s32 %s204, 1
      %p208 = scmp.eq.s32.totalorder %s23, 1
      %p209 = scmp.ne.s32.totalorder %s204, %s206
      %p210 = scmp.eq.s32.totalorder %s23, 0
      %p211 = por %p209, %p210
      %p212 = scmp.ne.s32.totalorder %s204, %s206
      %p213 = scmp.eq.s32.totalorder %s28, 1
      %p214 = por %p212, %p213
      %p215 = scmp.ne.s32.totalorder %s206, %s207
      %p216 = scmp.eq.s32.totalorder %s28, 0
      %p217 = por %p215, %p216
      %p218 = scmp.ne.s32.totalorder %s206, %s207
      %p219 = scmp.eq.s32.totalorder %s29, 1
      %p220 = por %p218, %p219
      %p222 = scmp.ne.s32.totalorder %s207, %s221
      %p223 = scmp.eq.s32.totalorder %s29, 0
      %p224 = por %p222, %p223
      %s226 = sadd.s32 %s225, 1
      %p229 = scmp.eq.s32.totalorder %s23, 1
      %p230 = scmp.ne.s32.totalorder %s225, %s227
      %p231 = scmp.eq.s32.totalorder %s23, 0
      %p232 = por %p230, %p231
      %p233 = scmp.ne.s32.totalorder %s225, %s227
      %p234 = scmp.eq.s32.totalorder %s28, 1
      %p235 = por %p233, %p234
      %p236 = scmp.ne.s32.totalorder %s227, %s228
      %p237 = scmp.eq.s32.totalorder %s28, 0
      %p238 = por %p236, %p237
      %p239 = scmp.ne.s32.totalorder %s227, %s228
      %p240 = scmp.eq.s32.totalorder %s29, 1
      %p241 = por %p239, %p240
      %p243 = scmp.ne.s32.totalorder %s228, %s242
      %p244 = scmp.eq.s32.totalorder %s29, 0
      %p245 = por %p243, %p244
      %s246 = ssub.s32 %s23, %s30
      %p247 = scmp.eq.s32.totalorder %s246, 0
      %s249 = sadd.s32 %s248, 1
      %s250 = scalar_select %p247, %s248, %s249
      %p253 = pneg %p247
      %p254 = scmp.eq.s32.totalorder %s23, 1
      %p255 = por %p253, %p254
      %p256 = scmp.ne.s32.totalorder %s248, %s251
      %p257 = scmp.eq.s32.totalorder %s23, 0
      %p258 = por %p256, %p257
      %p259 = scmp.ne.s32.totalorder %s248, %s251
      %p260 = scmp.eq.s32.totalorder %s28, 1
      %p261 = por %p259, %p260
      %p262 = scmp.ne.s32.totalorder %s251, %s252
      %p263 = scmp.eq.s32.totalorder %s28, 0
      %p264 = por %p262, %p263
      %p265 = scmp.ne.s32.totalorder %s251, %s252
      %p266 = scmp.eq.s32.totalorder %s29, 1
      %p267 = por %p265, %p266
      %p269 = scmp.ne.s32.totalorder %s252, %s268
      %p270 = scmp.eq.s32.totalorder %s29, 0
      %p271 = por %p269, %p270
      %p272 = scmp.le.s32.totalorder 1, %s23
      %p273 = scmp.lt.s32.totalorder %s23, 3
      %p274 = pnand %p272, %p273
      %p275 = pneg %p274
      // Predicated region
      $region9: #{tpu_custom_call.1} parent=5 // pred_check
        _
      $region10: #{tpu_custom_call.1} parent=5 // pred_check_branch
        %277 = sbr.rel (%p274) target = $region12
      $region11: #{tpu_custom_call.1} parent=5 // pred_region
        %s278 = ssub.s32 %s23, 1
        // Predicated region
        $region13: #{tpu_custom_call.1} parent=11 // pred_check
          %p279 = pneg %p70
        $region14: #{tpu_custom_call.1} parent=11 // pred_check_branch
          %281 = sbr.rel (%p279) target = $region16
        $region15: #{tpu_custom_call.1} parent=11 // pred_region
          _
        $region16: #{tpu_custom_call.1} parent=11 // pred_fallthru
          _
        // Predicated region
        $region17: #{tpu_custom_call.1} parent=11 // pred_check
          %p282 = pneg %p91
        $region18: #{tpu_custom_call.1} parent=11 // pred_check_branch
          %284 = sbr.rel (%p282) target = $region20
        $region19: #{tpu_custom_call.1} parent=11 // pred_region
          %s286 = ssub.s32 1536, 1536
          %287 = vsyncadd [#allocation6], %s286
          %s288 = sshll.u32 [#allocation5], 4
          %s289 = int_to_ptr.vmem [resolvable:$true] %s288
          %294 = dma.hbm_to_vmem [thread:$0]  %s2, 1536, %s289, [#allocation6], 64, 64, 4
        $region20: #{tpu_custom_call.1} parent=11 // pred_fallthru
          _
        // Predicated region
        $region21: #{tpu_custom_call.1} parent=11 // pred_check
          %p295 = pneg %p112
        $region22: #{tpu_custom_call.1} parent=11 // pred_check_branch
          %297 = sbr.rel (%p295) target = $region24
        $region23: #{tpu_custom_call.1} parent=11 // pred_region
          _
        $region24: #{tpu_custom_call.1} parent=11 // pred_fallthru
          _
        // Predicated region
        $region25: #{tpu_custom_call.1} parent=11 // pred_check
          %p298 = pneg %p133
        $region26: #{tpu_custom_call.1} parent=11 // pred_check_branch
          %300 = sbr.rel (%p298) target = $region28
        $region27: #{tpu_custom_call.1} parent=11 // pred_region
          _
        $region28: #{tpu_custom_call.1} parent=11 // pred_fallthru
          _
        // Predicated region
        $region29: #{tpu_custom_call.1} parent=11 // pred_check
          %p301 = pneg %p154
        $region30: #{tpu_custom_call.1} parent=11 // pred_check_branch
          %303 = sbr.rel (%p301) target = $region32
        $region31: #{tpu_custom_call.1} parent=11 // pred_region
          _
        $region32: #{tpu_custom_call.1} parent=11 // pred_fallthru
          _
        // Predicated region
        $region33: #{tpu_custom_call.1} parent=11 // pred_check
          %p304 = pneg %p175
        $region34: #{tpu_custom_call.1} parent=11 // pred_check_branch
          %306 = sbr.rel (%p304) target = $region36
        $region35: #{tpu_custom_call.1} parent=11 // pred_region
          %s308 = ssub.s32 3072, 3072
          %309 = vsyncadd [#allocation6], %s308
          %s310 = sshll.u32 [#allocation7], 4
          %s311 = int_to_ptr.vmem [resolvable:$true] %s310
          %316 = dma.hbm_to_vmem [thread:$0]  %s6, 3072, %s311, [#allocation6], 64, 64, 4
        $region36: #{tpu_custom_call.1} parent=11 // pred_fallthru
          _
        // Predicated region
        $region37: #{tpu_custom_call.1} parent=11 // pred_check
          %p317 = pneg %p196
        $region38: #{tpu_custom_call.1} parent=11 // pred_check_branch
          %319 = sbr.rel (%p317) target = $region40
        $region39: #{tpu_custom_call.1} parent=11 // pred_region
          _
        $region40: #{tpu_custom_call.1} parent=11 // pred_fallthru
          _
        // Predicated region
        $region41: #{tpu_custom_call.1} parent=11 // pred_check
          %p320 = pneg %p217
        $region42: #{tpu_custom_call.1} parent=11 // pred_check_branch
          %322 = sbr.rel (%p320) target = $region44
        $region43: #{tpu_custom_call.1} parent=11 // pred_region
          _
        $region44: #{tpu_custom_call.1} parent=11 // pred_fallthru
          _
        // Predicated region
        $region45: #{tpu_custom_call.1} parent=11 // pred_check
          %p323 = pneg %p238
        $region46: #{tpu_custom_call.1} parent=11 // pred_check_branch
          %325 = sbr.rel (%p323) target = $region48
        $region47: #{tpu_custom_call.1} parent=11 // pred_region
          _
        $region48: #{tpu_custom_call.1} parent=11 // pred_fallthru
          _
      $region12: #{tpu_custom_call.1} parent=5 // pred_fallthru
        _
      %p326 = scmp.lt.s32.totalorder %s23, 2
      // Predicated region
      $region49: #{tpu_custom_call.1} parent=5 // pred_check
        %p327 = pneg %p326
      $region50: #{tpu_custom_call.1} parent=5 // pred_check_branch
        %329 = sbr.rel (%p327) target = $region52
      $region51: #{tpu_custom_call.1} parent=5 // pred_region
        // Predicated region
        $region53: #{tpu_custom_call.1} parent=51 // pred_check
          %p330 = pneg %p43
        $region54: #{tpu_custom_call.1} parent=51 // pred_check_branch
          %332 = sbr.rel (%p330) target = $region56
        $region55: #{tpu_custom_call.1} parent=51 // pred_region
          %s333 = sand.u32 %s33, 1
          %s334 = scalar_lea.sflag [#allocation3], %s333
          %s335 = sand.u32 %s33, 1
          %s336 = smul.addr %s335, 16
          %s337 = scalar_lea.vmem [#allocation2], %s336
          %s339 = ssub.s32 256, 256
          %340 = vsyncadd %s334, %s339
          %s341 = smul.addr %s23, 2
          %s342 = smul.addr %s341, 128
          %s343 = scalar_lea.hbm %s0, %s342
          %s344 = sshll.u32 %s337, 4
          %s345 = int_to_ptr.vmem [resolvable:$true] %s344
          %350 = dma.hbm_to_vmem [thread:$0]  %s343, 256, %s345, %s334, 128, 128, 8
        $region56: #{tpu_custom_call.1} parent=51 // pred_fallthru
          _
      $region52: #{tpu_custom_call.1} parent=5 // pred_fallthru
        _
      %p351 = scmp.le.s32.totalorder 1, %s23
      %p352 = scmp.lt.s32.totalorder %s23, 3
      %p353 = pnand %p351, %p352
      %p354 = pneg %p353
      // Predicated region
      $region57: #{tpu_custom_call.1} parent=5 // pred_check
        _
      $region58: #{tpu_custom_call.1} parent=5 // pred_check_branch
        %356 = sbr.rel (%p353) target = $region60
      $region59: #{tpu_custom_call.1} parent=5 // pred_region
        %s357 = ssub.s32 %s23, 1
        %s358 = sand.u32 %s36, 1
        %s359 = scalar_lea.sflag [#allocation3], %s358
        %s360 = sand.u32 %s36, 1
        %s361 = smul.addr %s360, 16
        %s362 = scalar_lea.vmem [#allocation2], %s361
        // Predicated region
        $region61: #{tpu_custom_call.1} parent=59 // pred_check
          %p363 = pneg %p49
        $region62: #{tpu_custom_call.1} parent=59 // pred_check_branch
          %365 = sbr.rel (%p363) target = $region64
        $region63: #{tpu_custom_call.1} parent=59 // pred_region
          %366 = dma.done %s359, 256
        $region64: #{tpu_custom_call.1} parent=59 // pred_fallthru
          _
        // Predicated region
        $region65: #{tpu_custom_call.1} parent=59 // pred_check
          %p367 = pneg %p91
        $region66: #{tpu_custom_call.1} parent=59 // pred_check_branch
          %369 = sbr.rel (%p367) target = $region68
        $region67: #{tpu_custom_call.1} parent=59 // pred_region
          %370 = dma.done [#allocation6], 1536
        $region68: #{tpu_custom_call.1} parent=59 // pred_fallthru
          _
        // Predicated region
        $region69: #{tpu_custom_call.1} parent=59 // pred_check
          %p371 = pneg %p175
        $region70: #{tpu_custom_call.1} parent=59 // pred_check_branch
          %373 = sbr.rel (%p371) target = $region72
        $region71: #{tpu_custom_call.1} parent=59 // pred_region
          %374 = dma.done [#allocation6], 3072
        $region72: #{tpu_custom_call.1} parent=59 // pred_fallthru
          _
        %s375 = sand.u32 %s36, 1
        %s376 = scalar_lea.sflag [#allocation3], %s375
        %s377 = sand.u32 %s36, 1
        %s378 = smul.addr %s377, 16
        %s379 = scalar_lea.vmem [#allocation2], %s378
        %p380 = pneg %p49
        %p381 = pneg %p46
        %p382 = pneg %p70
        %p383 = pneg %p67
        %p384 = pneg %p91
        %p385 = pneg %p88
        %p386 = pneg %p112
        %p387 = pneg %p109
        %p388 = pneg %p133
        %p389 = pneg %p130
        %p390 = pneg %p154
        %p391 = pneg %p151
        %p392 = pneg %p175
        %p393 = pneg %p172
        %p394 = pneg %p196
        %p395 = pneg %p193
        %p396 = pneg %p217
        %p397 = pneg %p214
        %p398 = pneg %p238
        %p399 = pneg %p235
        %p400 = pneg %p264
        %p401 = pneg %p261
        %s402 = sand.u32 %s251, 1
        %s403 = scalar_lea.sflag [#allocation4], %s402
        %s404 = sand.u32 %s251, 1
        %s405 = smul.addr %s404, 16
        %s406 = scalar_lea.vmem [#allocation8], %s405
        %v408 = vlaneseq
        %v409 = vshrl.u32 %v408, 7
        %v410 = vadd.s32 %v409, 8
        %v411 = vlaneseq
        %v412 = vand.u32 %v411, 127
        %v413 = vadd.s32 %v409, 1
        %v414 = vadd.s32 %v410, 1
        %vm415 = vcmp.eq.s32.totalorder %v412, %v413
        %vm416 = vcmp.eq.s32.totalorder %v412, %v414
        %v417 = vsel %vm415, 1, 0
        %v418 = vsel %vm416, 1, 0
        %v419 = vcvt.s32.f32 %v417
        %v420 = vcvt.s32.f32 %v418
        %v421 = vsub.s32 %v409, 1
        %v422 = vsub.s32 %v410, 1
        %vm423 = vcmp.eq.s32.totalorder %v412, %v421
        %vm424 = vcmp.eq.s32.totalorder %v412, %v422
        %v425 = vsel %vm423, 1, 0
        %v426 = vsel %vm424, 1, 0
        %v427 = vcvt.s32.f32 %v425
        %v428 = vcvt.s32.f32 %v426
        %v429 = vld [vmem:[%s1] sm:$0x1]
        %v430 = vld [vmem:[%s362] sm:$0xff]
        %v431 = vld [vmem:[%s362 + $0x8] sm:$0xff]
        %vm432 = vcmask 130048
        %v434 = vsel %vm432, %v419, 0
        %v437 = vsel %vm432, %v420, 0
        %439 = vmatprep.subr.mxu0 0.0
        %440 = vmatpush1.msra.mxu0 0.0
        %441 = vmatprep.subr.mxu0 0.0
        %442 = vmatpush1.msra.mxu0 0.0
        %443 = vmatprep.subr.mxu0 0.0
        %444 = vmatpush1.msra.mxu0 0.0
        %445 = vmatprep.subr.mxu0 0.0
        %446 = vmatpush1.msra.mxu0 0.0
        %447 = vmatprep.subr.mxu0 0.0
        %448 = vmatpush1.msra.mxu0 0.0
        %449 = vmatprep.subr.mxu0 0.0
        %450 = vmatpush1.msra.mxu0 0.0
        %451 = vmatprep.subr.mxu0 0.0
        %452 = vmatpush1.msra.mxu0 0.0
        %453 = vmatprep.subr.mxu0 0.0
        %454 = vmatpush1.msra.mxu0 0.0
        %455 = vmatprep.subr.mxu0 0.0
        %456 = vmatpush1.msra.mxu0 0.0
        %457 = vmatprep.subr.mxu0 0.0
        %458 = vmatpush1.msra.mxu0 0.0
        %459 = vmatprep.subr.mxu0 0.0
        %460 = vmatpush1.msra.mxu0 0.0
        %461 = vmatprep.subr.mxu0 0.0
        %462 = vmatpush1.msra.mxu0 0.0
        %463 = vmatprep.subr.mxu0 0.0
        %464 = vmatpush1.msra.mxu0 0.0
        %465 = vmatprep.subr.mxu0 0.0
        %466 = vmatpush1.msra.mxu0 0.0
        %467 = vmatprep.subr.mxu0 0.0
        %468 = vmatpush1.msra.mxu0 %v431
        %469 = vmatprep.subr.mxu0 0.0
        %470 = vmatpush1.msra.mxu0 %v430
        %471 = vmatprep.subr.mxu0 0.0
        %472 = vmatpush2.msra.mxu0 0.0
        %473 = vmatprep.subr.mxu0 0.0
        %474 = vmatpush2.msra.mxu0 0.0
        %475 = vmatprep.subr.mxu0 0.0
        %476 = vmatpush2.msra.mxu0 0.0
        %477 = vmatprep.subr.mxu0 0.0
        %478 = vmatpush2.msra.mxu0 0.0
        %479 = vmatprep.subr.mxu0 0.0
        %480 = vmatpush2.msra.mxu0 0.0
        %481 = vmatprep.subr.mxu0 0.0
        %482 = vmatpush2.msra.mxu0 0.0
        %483 = vmatprep.subr.mxu0 0.0
        %484 = vmatpush2.msra.mxu0 0.0
        %485 = vmatprep.subr.mxu0 0.0
        %486 = vmatpush2.msra.mxu0 0.0
        %487 = vmatprep.subr.mxu0 0.0
        %488 = vmatpush2.msra.mxu0 0.0
        %489 = vmatprep.subr.mxu0 0.0
        %490 = vmatpush2.msra.mxu0 0.0
        %491 = vmatprep.subr.mxu0 0.0
        %492 = vmatpush2.msra.mxu0 0.0
        %493 = vmatprep.subr.mxu0 0.0
        %494 = vmatpush2.msra.mxu0 0.0
        %495 = vmatprep.subr.mxu0 0.0
        %496 = vmatpush2.msra.mxu0 0.0
        %497 = vmatprep.subr.mxu0 0.0
        %498 = vmatpush2.msra.mxu0 0.0
        %499 = vmatprep.subr.mxu0 0.0
        %500 = vmatpush2.msra.mxu0 0.0
        %501 = vmatprep.subr.mxu0 0.0
        %502 = vmatpush2.msra.mxu0 0.0
        %503 = vmatprep.mubr.f32.mxu0 0.0
        %504 = vmatmul.mubr.f32.gmra.mxu0 %v434
        %v505 = vpop.f32.mrf.mxu0
        %v506 = vadd.f32 0.0, %v505
        %v507 = vpop.f32.mrf.mxu0
        %508 = vmatprep.mubr.f32.mxu0 0.0
        %509 = vmatmul.mubr.f32.gmra.mxu0 %v437
        %v510 = vpop.f32.mrf.mxu0
        %v511 = vadd.f32 0.0, %v510
        %v512 = vpop.f32.mrf.mxu0
        %513 = vdwg.mxu0
        %v515 = vsel %vm432, %v427, 0
        %v518 = vsel %vm432, %v428, 0
        %520 = vmatprep.subr.mxu0 0.0
        %521 = vmatpush1.msra.mxu0 0.0
        %522 = vmatprep.subr.mxu0 0.0
        %523 = vmatpush1.msra.mxu0 0.0
        %524 = vmatprep.subr.mxu0 0.0
        %525 = vmatpush1.msra.mxu0 0.0
        %526 = vmatprep.subr.mxu0 0.0
        %527 = vmatpush1.msra.mxu0 0.0
        %528 = vmatprep.subr.mxu0 0.0
        %529 = vmatpush1.msra.mxu0 0.0
        %530 = vmatprep.subr.mxu0 0.0
        %531 = vmatpush1.msra.mxu0 0.0
        %532 = vmatprep.subr.mxu0 0.0
        %533 = vmatpush1.msra.mxu0 0.0
        %534 = vmatprep.subr.mxu0 0.0
        %535 = vmatpush1.msra.mxu0 0.0
        %536 = vmatprep.subr.mxu0 0.0
        %537 = vmatpush1.msra.mxu0 0.0
        %538 = vmatprep.subr.mxu0 0.0
        %539 = vmatpush1.msra.mxu0 0.0
        %540 = vmatprep.subr.mxu0 0.0
        %541 = vmatpush1.msra.mxu0 0.0
        %542 = vmatprep.subr.mxu0 0.0
        %543 = vmatpush1.msra.mxu0 0.0
        %544 = vmatprep.subr.mxu0 0.0
        %545 = vmatpush1.msra.mxu0 0.0
        %546 = vmatprep.subr.mxu0 0.0
        %547 = vmatpush1.msra.mxu0 0.0
        %548 = vmatprep.subr.mxu0 0.0
        %549 = vmatpush1.msra.mxu0 %v431
        %550 = vmatprep.subr.mxu0 0.0
        %551 = vmatpush1.msra.mxu0 %v430
        %552 = vmatprep.subr.mxu0 0.0
        %553 = vmatpush2.msra.mxu0 0.0
        %554 = vmatprep.subr.mxu0 0.0
        %555 = vmatpush2.msra.mxu0 0.0
        %556 = vmatprep.subr.mxu0 0.0
        %557 = vmatpush2.msra.mxu0 0.0
        %558 = vmatprep.subr.mxu0 0.0
        %559 = vmatpush2.msra.mxu0 0.0
        %560 = vmatprep.subr.mxu0 0.0
        %561 = vmatpush2.msra.mxu0 0.0
        %562 = vmatprep.subr.mxu0 0.0
        %563 = vmatpush2.msra.mxu0 0.0
        %564 = vmatprep.subr.mxu0 0.0
        %565 = vmatpush2.msra.mxu0 0.0
        %566 = vmatprep.subr.mxu0 0.0
        %567 = vmatpush2.msra.mxu0 0.0
        %568 = vmatprep.subr.mxu0 0.0
        %569 = vmatpush2.msra.mxu0 0.0
        %570 = vmatprep.subr.mxu0 0.0
        %571 = vmatpush2.msra.mxu0 0.0
        %572 = vmatprep.subr.mxu0 0.0
        %573 = vmatpush2.msra.mxu0 0.0
        %574 = vmatprep.subr.mxu0 0.0
        %575 = vmatpush2.msra.mxu0 0.0
        %576 = vmatprep.subr.mxu0 0.0
        %577 = vmatpush2.msra.mxu0 0.0
        %578 = vmatprep.subr.mxu0 0.0
        %579 = vmatpush2.msra.mxu0 0.0
        %580 = vmatprep.subr.mxu0 0.0
        %581 = vmatpush2.msra.mxu0 0.0
        %582 = vmatprep.subr.mxu0 0.0
        %583 = vmatpush2.msra.mxu0 0.0
        %584 = vmatprep.mubr.f32.mxu0 0.0
        %585 = vmatmul.mubr.f32.gmra.mxu0 %v515
        %v586 = vpop.f32.mrf.mxu0
        %v587 = vadd.f32 0.0, %v586
        %v588 = vpop.f32.mrf.mxu0
        %589 = vmatprep.mubr.f32.mxu0 0.0
        %590 = vmatmul.mubr.f32.gmra.mxu0 %v518
        %v591 = vpop.f32.mrf.mxu0
        %v592 = vadd.f32 0.0, %v591
        %v593 = vpop.f32.mrf.mxu0
        %594 = vdwg.mxu0
        %v595 = vpack.c.bf16 %v431, %v430
        %s596 = scalar_lea.vmem [#allocation5], 32
        %v597 = vld [vmem:[%s596] sm:$0xf]
        %v598 = vld [vmem:[%s596 + $0x4] sm:$0xf]
        %v599 = vld [vmem:[%s596 + $0x8] sm:$0xf]
        %v600 = vld [vmem:[%s596 + $0xc] sm:$0xf]
        %v601 = vld [vmem:[%s596 + $0x10] sm:$0xf]
        %v602 = vld [vmem:[%s596 + $0x14] sm:$0xf]
        %v603 = vld [vmem:[%s596 + $0x18] sm:$0xf]
        %v604 = vld [vmem:[%s596 + $0x1c] sm:$0xf]
        %v605 = vpack.c.bf16 %v511, %v506
        %s606 = scalar_lea.vmem [#allocation5], 64
        %v607 = vld [vmem:[%s606] sm:$0xf]
        %v608 = vld [vmem:[%s606 + $0x4] sm:$0xf]
        %v609 = vld [vmem:[%s606 + $0x8] sm:$0xf]
        %v610 = vld [vmem:[%s606 + $0xc] sm:$0xf]
        %v611 = vld [vmem:[%s606 + $0x10] sm:$0xf]
        %v612 = vld [vmem:[%s606 + $0x14] sm:$0xf]
        %v613 = vld [vmem:[%s606 + $0x18] sm:$0xf]
        %v614 = vld [vmem:[%s606 + $0x1c] sm:$0xf]
        %v623 = vunpack.c.l.b16 %v607
        %v624 = vunpack.c.l.b16 %v608
        %v625 = vunpack.c.l.b16 %v609
        %v626 = vunpack.c.l.b16 %v610
        %v627 = vunpack.c.l.b16 %v611
        %v628 = vunpack.c.l.b16 %v612
        %v629 = vunpack.c.l.b16 %v613
        %v630 = vunpack.c.l.b16 %v614
        %v631 = vpack.c.b16 %v624, %v623
        %v632 = vpack.c.b16 %v626, %v625
        %v633 = vpack.c.b16 %v628, %v627
        %v634 = vpack.c.b16 %v630, %v629
        %vm639 = vcmask 523264
        %v641 = vsel %vm639, %v605, 0
        %643 = vmatprep.subr.bf16.mxu0 0
        %644 = vmatpush1.bf16.msra.mxu0 0
        %645 = vmatprep.subr.bf16.mxu0 0
        %646 = vmatpush1.bf16.msra.mxu0 0
        %647 = vmatprep.subr.bf16.mxu0 0
        %648 = vmatpush1.bf16.msra.mxu0 0
        %649 = vmatprep.subr.bf16.mxu0 0
        %650 = vmatpush1.bf16.msra.mxu0 0
        %651 = vmatprep.subr.bf16.mxu0 0
        %652 = vmatpush1.bf16.msra.mxu0 %v634
        %653 = vmatprep.subr.bf16.mxu0 0
        %654 = vmatpush1.bf16.msra.mxu0 %v633
        %655 = vmatprep.subr.bf16.mxu0 0
        %656 = vmatpush1.bf16.msra.mxu0 %v632
        %657 = vmatprep.subr.bf16.mxu0 0
        %658 = vmatpush1.bf16.msra.mxu0 %v631
        %659 = vmatprep.subr.bf16.mxu0 0
        %660 = vmatpush2.bf16.msra.mxu0 0
        %661 = vmatprep.subr.bf16.mxu0 0
        %662 = vmatpush2.bf16.msra.mxu0 0
        %663 = vmatprep.subr.bf16.mxu0 0
        %664 = vmatpush2.bf16.msra.mxu0 0
        %665 = vmatprep.subr.bf16.mxu0 0
        %666 = vmatpush2.bf16.msra.mxu0 0
        %667 = vmatprep.subr.bf16.mxu0 0
        %668 = vmatpush2.bf16.msra.mxu0 0
        %669 = vmatprep.subr.bf16.mxu0 0
        %670 = vmatpush2.bf16.msra.mxu0 0
        %671 = vmatprep.subr.bf16.mxu0 0
        %672 = vmatpush2.bf16.msra.mxu0 0
        %673 = vmatprep.subr.bf16.mxu0 0
        %674 = vmatpush2.bf16.msra.mxu0 0
        %675 = vmatprep.mubr.bf16.mxu0 0
        %676 = vmatmul.mubr.bf16.gmra.mxu0 %v641
        %v677 = vpop.f32.mrf.mxu0
        %v678 = vadd.f32 0.0, %v677
        %v679 = vpop.f32.mrf.mxu0
        %v680 = vpop.f32.mrf.mxu0
        %v681 = vadd.f32 0.0, %v680
        %v682 = vpop.f32.mrf.mxu0
        %683 = vdwg.mxu0
        %v692 = vunpack.c.l.b16 %v597
        %v693 = vunpack.c.l.b16 %v598
        %v694 = vunpack.c.l.b16 %v599
        %v695 = vunpack.c.l.b16 %v600
        %v696 = vunpack.c.l.b16 %v601
        %v697 = vunpack.c.l.b16 %v602
        %v698 = vunpack.c.l.b16 %v603
        %v699 = vunpack.c.l.b16 %v604
        %v700 = vpack.c.b16 %v693, %v692
        %v701 = vpack.c.b16 %v695, %v694
        %v702 = vpack.c.b16 %v697, %v696
        %v703 = vpack.c.b16 %v699, %v698
        %v709 = vsel %vm639, %v595, 0
        %711 = vmatprep.subr.bf16.mxu0 0
        %712 = vmatpush1.bf16.msra.mxu0 0
        %713 = vmatprep.subr.bf16.mxu0 0
        %714 = vmatpush1.bf16.msra.mxu0 0
        %715 = vmatprep.subr.bf16.mxu0 0
        %716 = vmatpush1.bf16.msra.mxu0 0
        %717 = vmatprep.subr.bf16.mxu0 0
        %718 = vmatpush1.bf16.msra.mxu0 0
        %719 = vmatprep.subr.bf16.mxu0 0
        %720 = vmatpush1.bf16.msra.mxu0 %v703
        %721 = vmatprep.subr.bf16.mxu0 0
        %722 = vmatpush1.bf16.msra.mxu0 %v702
        %723 = vmatprep.subr.bf16.mxu0 0
        %724 = vmatpush1.bf16.msra.mxu0 %v701
        %725 = vmatprep.subr.bf16.mxu0 0
        %726 = vmatpush1.bf16.msra.mxu0 %v700
        %727 = vmatprep.subr.bf16.mxu0 0
        %728 = vmatpush2.bf16.msra.mxu0 0
        %729 = vmatprep.subr.bf16.mxu0 0
        %730 = vmatpush2.bf16.msra.mxu0 0
        %731 = vmatprep.subr.bf16.mxu0 0
        %732 = vmatpush2.bf16.msra.mxu0 0
        %733 = vmatprep.subr.bf16.mxu0 0
        %734 = vmatpush2.bf16.msra.mxu0 0
        %735 = vmatprep.subr.bf16.mxu0 0
        %736 = vmatpush2.bf16.msra.mxu0 0
        %737 = vmatprep.subr.bf16.mxu0 0
        %738 = vmatpush2.bf16.msra.mxu0 0
        %739 = vmatprep.subr.bf16.mxu0 0
        %740 = vmatpush2.bf16.msra.mxu0 0
        %741 = vmatprep.subr.bf16.mxu0 0
        %742 = vmatpush2.bf16.msra.mxu0 0
        %743 = vmatprep.mubr.bf16.mxu0 0
        %744 = vmatmul.mubr.bf16.gmra.mxu0 %v709
        %v745 = vpop.f32.mrf.mxu0
        %v746 = vadd.f32 %v678, %v745
        %v747 = vpop.f32.mrf.mxu0
        %v748 = vpop.f32.mrf.mxu0
        %v749 = vadd.f32 %v681, %v748
        %v750 = vpop.f32.mrf.mxu0
        %751 = vdwg.mxu0
        %v752 = vpack.c.bf16 %v592, %v587
        %v753 = vld [vmem:[#allocation5] sm:$0xf]
        %v754 = vld [vmem:[#allocation5 + $0x4] sm:$0xf]
        %v755 = vld [vmem:[#allocation5 + $0x8] sm:$0xf]
        %v756 = vld [vmem:[#allocation5 + $0xc] sm:$0xf]
        %v757 = vld [vmem:[#allocation5 + $0x10] sm:$0xf]
        %v758 = vld [vmem:[#allocation5 + $0x14] sm:$0xf]
        %v759 = vld [vmem:[#allocation5 + $0x18] sm:$0xf]
        %v760 = vld [vmem:[#allocation5 + $0x1c] sm:$0xf]
        %v769 = vunpack.c.l.b16 %v753
        %v770 = vunpack.c.l.b16 %v754
        %v771 = vunpack.c.l.b16 %v755
        %v772 = vunpack.c.l.b16 %v756
        %v773 = vunpack.c.l.b16 %v757
        %v774 = vunpack.c.l.b16 %v758
        %v775 = vunpack.c.l.b16 %v759
        %v776 = vunpack.c.l.b16 %v760
        %v777 = vpack.c.b16 %v770, %v769
        %v778 = vpack.c.b16 %v772, %v771
        %v779 = vpack.c.b16 %v774, %v773
        %v780 = vpack.c.b16 %v776, %v775
        %v786 = vsel %vm639, %v752, 0
        %788 = vmatprep.subr.bf16.mxu0 0
        %789 = vmatpush1.bf16.msra.mxu0 0
        %790 = vmatprep.subr.bf16.mxu0 0
        %791 = vmatpush1.bf16.msra.mxu0 0
        %792 = vmatprep.subr.bf16.mxu0 0
        %793 = vmatpush1.bf16.msra.mxu0 0
        %794 = vmatprep.subr.bf16.mxu0 0
        %795 = vmatpush1.bf16.msra.mxu0 0
        %796 = vmatprep.subr.bf16.mxu0 0
        %797 = vmatpush1.bf16.msra.mxu0 %v780
        %798 = vmatprep.subr.bf16.mxu0 0
        %799 = vmatpush1.bf16.msra.mxu0 %v779
        %800 = vmatprep.subr.bf16.mxu0 0
        %801 = vmatpush1.bf16.msra.mxu0 %v778
        %802 = vmatprep.subr.bf16.mxu0 0
        %803 = vmatpush1.bf16.msra.mxu0 %v777
        %804 = vmatprep.subr.bf16.mxu0 0
        %805 = vmatpush2.bf16.msra.mxu0 0
        %806 = vmatprep.subr.bf16.mxu0 0
        %807 = vmatpush2.bf16.msra.mxu0 0
        %808 = vmatprep.subr.bf16.mxu0 0
        %809 = vmatpush2.bf16.msra.mxu0 0
        %810 = vmatprep.subr.bf16.mxu0 0
        %811 = vmatpush2.bf16.msra.mxu0 0
        %812 = vmatprep.subr.bf16.mxu0 0
        %813 = vmatpush2.bf16.msra.mxu0 0
        %814 = vmatprep.subr.bf16.mxu0 0
        %815 = vmatpush2.bf16.msra.mxu0 0
        %816 = vmatprep.subr.bf16.mxu0 0
        %817 = vmatpush2.bf16.msra.mxu0 0
        %818 = vmatprep.subr.bf16.mxu0 0
        %819 = vmatpush2.bf16.msra.mxu0 0
        %820 = vmatprep.mubr.bf16.mxu0 0
        %821 = vmatmul.mubr.bf16.gmra.mxu0 %v786
        %v822 = vpop.f32.mrf.mxu0
        %v823 = vadd.f32 0.0, %v822
        %v824 = vpop.f32.mrf.mxu0
        %v825 = vpop.f32.mrf.mxu0
        %v826 = vadd.f32 0.0, %v825
        %v827 = vpop.f32.mrf.mxu0
        %828 = vdwg.mxu0
        %v829 = vadd.f32 %v746, %v823
        %v830 = vadd.f32 %v749, %v826
        %v831 = vld [vmem:[%s3] sm:$0x1]
        %v833 = vlaneseq
        %v834 = vshrl.u32 %v833, 7
        %v835 = vsub.s32 0, %v834
        %v836 = vrot.slane %v831, %v835
        %v838 = vadd.f32 %v829, %v836
        %v839 = vadd.f32 %v830, %v836
        %v840 = vld [vmem:[%s4] sm:$0x1]
        %v841 = vld [vmem:[%s5] sm:$0x1]
        %v842 = vadd.f32 %v838, %v839
        %v843 = vrot.slane %v842, 4
        %v844 = vadd.f32 %v842, %v843
        %v845 = vrot.slane %v844, 2
        %v846 = vadd.f32 %v844, %v845
        %v847 = vrot.slane %v846, 1
        %v848 = vadd.f32 %v846, %v847
        %v849 = vmul.f32 %v838, %v838
        %v850 = vmul.f32 %v839, %v839
        %v851 = vadd.f32 %v849, %v850
        %v852 = vrot.slane %v851, 4
        %v853 = vadd.f32 %v851, %v852
        %v854 = vrot.slane %v853, 2
        %v855 = vadd.f32 %v853, %v854
        %v856 = vrot.slane %v855, 1
        %v857 = vadd.f32 %v855, %v856
        %vm858 = vcmp.eq.f32.partialorder %v429, 0.0
        %v859 = vsel %vm858, 1, 0
        %v860 = vcvt.s32.f32 %v859
        %v861 = vmul.f32 %v848, %v860
        %vm862 = vcmask 1040384
        %v863 = vsel %vm862, %v861, 0.0
        %864 = vadd.xlane.f32.xlu0 %v863
        %v865 = vpop.xlane.xlu0 %864
        %v866 = vrot.slane %v865, 4
        %v867 = vadd.f32 %v865, %v866
        %v868 = vrot.slane %v867, 2
        %v869 = vadd.f32 %v867, %v868
        %v870 = vrot.slane %v869, 1
        %v871 = vadd.f32 %v869, %v870
        %s872 = vtos %v871
        %v873 = vstv %s872
        %v874 = vrcp.pop 1024.0
        %v875 = vmul.f32 %v873, %v874
        %v876 = vmul.f32 %v857, %v860
        %v877 = vsel %vm862, %v876, 0.0
        %878 = vadd.xlane.f32.xlu0 %v877
        %v879 = vpop.xlane.xlu0 %878
        %v880 = vrot.slane %v879, 4
        %v881 = vadd.f32 %v879, %v880
        %v882 = vrot.slane %v881, 2
        %v883 = vadd.f32 %v881, %v882
        %v884 = vrot.slane %v883, 1
        %v885 = vadd.f32 %v883, %v884
        %s886 = vtos %v885
        %v887 = vstv %s886
        %v888 = vmul.f32 %v887, %v874
        %v889 = vmul.f32 %v875, %v875
        %v890 = vsub.f32 %v888, %v889
        %v891 = vmul.f32 %v875, %v860
        %v892 = vadd.f32 %v891, 0.0
        %v893 = vadd.f32 %v890, 1e-05
        %v894 = vrsqrt.pop %v893
        %v895 = vmul.f32 %v894, %v860
        %v896 = vadd.f32 %v895, 0.0
        %vm897 = vcmp.eq.f32.partialorder %v429, 1.0
        %v898 = vsel %vm897, 1, 0
        %v899 = vcvt.s32.f32 %v898
        %v900 = vmul.f32 %v848, %v899
        %v901 = vsel %vm862, %v900, 0.0
        %902 = vadd.xlane.f32.xlu0 %v901
        %v903 = vpop.xlane.xlu0 %902
        %v904 = vrot.slane %v903, 4
        %v905 = vadd.f32 %v903, %v904
        %v906 = vrot.slane %v905, 2
        %v907 = vadd.f32 %v905, %v906
        %v908 = vrot.slane %v907, 1
        %v909 = vadd.f32 %v907, %v908
        %s910 = vtos %v909
        %v911 = vstv %s910
        %v912 = vmul.f32 %v911, %v874
        %v913 = vmul.f32 %v857, %v899
        %v914 = vsel %vm862, %v913, 0.0
        %915 = vadd.xlane.f32.xlu0 %v914
        %v916 = vpop.xlane.xlu0 %915
        %v917 = vrot.slane %v916, 4
        %v918 = vadd.f32 %v916, %v917
        %v919 = vrot.slane %v918, 2
        %v920 = vadd.f32 %v918, %v919
        %v921 = vrot.slane %v920, 1
        %v922 = vadd.f32 %v920, %v921
        %s923 = vtos %v922
        %v924 = vstv %s923
        %v925 = vmul.f32 %v924, %v874
        %v926 = vmul.f32 %v912, %v912
        %v927 = vsub.f32 %v925, %v926
        %v928 = vmul.f32 %v912, %v899
        %v929 = vadd.f32 %v892, %v928
        %v930 = vadd.f32 %v927, 1e-05
        %v931 = vrsqrt.pop %v930
        %v932 = vmul.f32 %v931, %v899
        %v933 = vadd.f32 %v896, %v932
        %v935 = vlaneseq
        %v936 = vshrl.u32 %v935, 7
        %v937 = vsub.s32 0, %v936
        %v938 = vrot.slane %v929, %v937
        %v940 = vsub.f32 %v838, %v938
        %v941 = vsub.f32 %v839, %v938
        %v943 = vlaneseq
        %v944 = vshrl.u32 %v943, 7
        %v945 = vsub.s32 0, %v944
        %v946 = vrot.slane %v933, %v945
        %v948 = vmul.f32 %v940, %v946
        %v949 = vmul.f32 %v941, %v946
        %v951 = vlaneseq
        %v952 = vshrl.u32 %v951, 7
        %v953 = vsub.s32 0, %v952
        %v954 = vrot.slane %v840, %v953
        %v956 = vmul.f32 %v948, %v954
        %v957 = vmul.f32 %v949, %v954
        %v959 = vlaneseq
        %v960 = vshrl.u32 %v959, 7
        %v961 = vsub.s32 0, %v960
        %v962 = vrot.slane %v841, %v961
        %v964 = vadd.f32 %v956, %v962
        %v965 = vadd.f32 %v957, %v962
        %v966 = vmul.f32 %v964, 0.5
        %v967 = vmul.f32 %v965, 0.5
        %v968 = vmul.f32 %v964, 0.044715
        %v969 = vmul.f32 %v965, 0.044715
        %v970 = vmul.f32 %v968, %v964
        %v971 = vmul.f32 %v969, %v965
        %v972 = vmul.f32 %v970, %v964
        %v973 = vmul.f32 %v971, %v965
        %v974 = vadd.f32 %v964, %v972
        %v975 = vadd.f32 %v965, %v973
        %v976 = vmul.f32 %v974, 0.7978846
        %v977 = vmul.f32 %v975, 0.7978846
        %v978 = vtanh.pop %v976
        %v979 = vtanh.pop %v977
        %v980 = vadd.f32 %v978, 1.0
        %v981 = vadd.f32 %v979, 1.0
        %v982 = vmul.f32 %v966, %v980
        %v983 = vmul.f32 %v967, %v981
        %984 = vmatprep.subr.mxu0 0.0
        %985 = vmatpush1.msra.mxu0 0.0
        %986 = vmatprep.subr.mxu0 0.0
        %987 = vmatpush1.msra.mxu0 0.0
        %988 = vmatprep.subr.mxu0 0.0
        %989 = vmatpush1.msra.mxu0 0.0
        %990 = vmatprep.subr.mxu0 0.0
        %991 = vmatpush1.msra.mxu0 0.0
        %992 = vmatprep.subr.mxu0 0.0
        %993 = vmatpush1.msra.mxu0 0.0
        %994 = vmatprep.subr.mxu0 0.0
        %995 = vmatpush1.msra.mxu0 0.0
        %996 = vmatprep.subr.mxu0 0.0
        %997 = vmatpush1.msra.mxu0 0.0
        %998 = vmatprep.subr.mxu0 0.0
        %999 = vmatpush1.msra.mxu0 0.0
        %1000 = vmatprep.subr.mxu0 0.0
        %1001 = vmatpush1.msra.mxu0 0.0
        %1002 = vmatprep.subr.mxu0 0.0
        %1003 = vmatpush1.msra.mxu0 0.0
        %1004 = vmatprep.subr.mxu0 0.0
        %1005 = vmatpush1.msra.mxu0 0.0
        %1006 = vmatprep.subr.mxu0 0.0
        %1007 = vmatpush1.msra.mxu0 0.0
        %1008 = vmatprep.subr.mxu0 0.0
        %1009 = vmatpush1.msra.mxu0 0.0
        %1010 = vmatprep.subr.mxu0 0.0
        %1011 = vmatpush1.msra.mxu0 0.0
        %1012 = vmatprep.subr.mxu0 0.0
        %1013 = vmatpush1.msra.mxu0 %v983
        %1014 = vmatprep.subr.mxu0 0.0
        %1015 = vmatpush1.msra.mxu0 %v982
        %1016 = vmatprep.subr.mxu0 0.0
        %1017 = vmatpush2.msra.mxu0 0.0
        %1018 = vmatprep.subr.mxu0 0.0
        %1019 = vmatpush2.msra.mxu0 0.0
        %1020 = vmatprep.subr.mxu0 0.0
        %1021 = vmatpush2.msra.mxu0 0.0
        %1022 = vmatprep.subr.mxu0 0.0
        %1023 = vmatpush2.msra.mxu0 0.0
        %1024 = vmatprep.subr.mxu0 0.0
        %1025 = vmatpush2.msra.mxu0 0.0
        %1026 = vmatprep.subr.mxu0 0.0
        %1027 = vmatpush2.msra.mxu0 0.0
        %1028 = vmatprep.subr.mxu0 0.0
        %1029 = vmatpush2.msra.mxu0 0.0
        %1030 = vmatprep.subr.mxu0 0.0
        %1031 = vmatpush2.msra.mxu0 0.0
        %1032 = vmatprep.subr.mxu0 0.0
        %1033 = vmatpush2.msra.mxu0 0.0
        %1034 = vmatprep.subr.mxu0 0.0
        %1035 = vmatpush2.msra.mxu0 0.0
        %1036 = vmatprep.subr.mxu0 0.0
        %1037 = vmatpush2.msra.mxu0 0.0
        %1038 = vmatprep.subr.mxu0 0.0
        %1039 = vmatpush2.msra.mxu0 0.0
        %1040 = vmatprep.subr.mxu0 0.0
        %1041 = vmatpush2.msra.mxu0 0.0
        %1042 = vmatprep.subr.mxu0 0.0
        %1043 = vmatpush2.msra.mxu0 0.0
        %1044 = vmatprep.subr.mxu0 0.0
        %1045 = vmatpush2.msra.mxu0 0.0
        %1046 = vmatprep.subr.mxu0 0.0
        %1047 = vmatpush2.msra.mxu0 0.0
        %1048 = vmatprep.mubr.f32.mxu0 0.0
        %1049 = vmatmul.mubr.f32.gmra.mxu0 %v434
        %v1050 = vpop.f32.mrf.mxu0
        %v1051 = vadd.f32 0.0, %v1050
        %v1052 = vpop.f32.mrf.mxu0
        %1053 = vmatprep.mubr.f32.mxu0 0.0
        %1054 = vmatmul.mubr.f32.gmra.mxu0 %v437
        %v1055 = vpop.f32.mrf.mxu0
        %v1056 = vadd.f32 0.0, %v1055
        %v1057 = vpop.f32.mrf.mxu0
        %1058 = vdwg.mxu0
        %1059 = vmatprep.subr.mxu0 0.0
        %1060 = vmatpush1.msra.mxu0 0.0
        %1061 = vmatprep.subr.mxu0 0.0
        %1062 = vmatpush1.msra.mxu0 0.0
        %1063 = vmatprep.subr.mxu0 0.0
        %1064 = vmatpush1.msra.mxu0 0.0
        %1065 = vmatprep.subr.mxu0 0.0
        %1066 = vmatpush1.msra.mxu0 0.0
        %1067 = vmatprep.subr.mxu0 0.0
        %1068 = vmatpush1.msra.mxu0 0.0
        %1069 = vmatprep.subr.mxu0 0.0
        %1070 = vmatpush1.msra.mxu0 0.0
        %1071 = vmatprep.subr.mxu0 0.0
        %1072 = vmatpush1.msra.mxu0 0.0
        %1073 = vmatprep.subr.mxu0 0.0
        %1074 = vmatpush1.msra.mxu0 0.0
        %1075 = vmatprep.subr.mxu0 0.0
        %1076 = vmatpush1.msra.mxu0 0.0
        %1077 = vmatprep.subr.mxu0 0.0
        %1078 = vmatpush1.msra.mxu0 0.0
        %1079 = vmatprep.subr.mxu0 0.0
        %1080 = vmatpush1.msra.mxu0 0.0
        %1081 = vmatprep.subr.mxu0 0.0
        %1082 = vmatpush1.msra.mxu0 0.0
        %1083 = vmatprep.subr.mxu0 0.0
        %1084 = vmatpush1.msra.mxu0 0.0
        %1085 = vmatprep.subr.mxu0 0.0
        %1086 = vmatpush1.msra.mxu0 0.0
        %1087 = vmatprep.subr.mxu0 0.0
        %1088 = vmatpush1.msra.mxu0 %v983
        %1089 = vmatprep.subr.mxu0 0.0
        %1090 = vmatpush1.msra.mxu0 %v982
        %1091 = vmatprep.subr.mxu0 0.0
        %1092 = vmatpush2.msra.mxu0 0.0
        %1093 = vmatprep.subr.mxu0 0.0
        %1094 = vmatpush2.msra.mxu0 0.0
        %1095 = vmatprep.subr.mxu0 0.0
        %1096 = vmatpush2.msra.mxu0 0.0
        %1097 = vmatprep.subr.mxu0 0.0
        %1098 = vmatpush2.msra.mxu0 0.0
        %1099 = vmatprep.subr.mxu0 0.0
        %1100 = vmatpush2.msra.mxu0 0.0
        %1101 = vmatprep.subr.mxu0 0.0
        %1102 = vmatpush2.msra.mxu0 0.0
        %1103 = vmatprep.subr.mxu0 0.0
        %1104 = vmatpush2.msra.mxu0 0.0
        %1105 = vmatprep.subr.mxu0 0.0
        %1106 = vmatpush2.msra.mxu0 0.0
        %1107 = vmatprep.subr.mxu0 0.0
        %1108 = vmatpush2.msra.mxu0 0.0
        %1109 = vmatprep.subr.mxu0 0.0
        %1110 = vmatpush2.msra.mxu0 0.0
        %1111 = vmatprep.subr.mxu0 0.0
        %1112 = vmatpush2.msra.mxu0 0.0
        %1113 = vmatprep.subr.mxu0 0.0
        %1114 = vmatpush2.msra.mxu0 0.0
        %1115 = vmatprep.subr.mxu0 0.0
        %1116 = vmatpush2.msra.mxu0 0.0
        %1117 = vmatprep.subr.mxu0 0.0
        %1118 = vmatpush2.msra.mxu0 0.0
        %1119 = vmatprep.subr.mxu0 0.0
        %1120 = vmatpush2.msra.mxu0 0.0
        %1121 = vmatprep.subr.mxu0 0.0
        %1122 = vmatpush2.msra.mxu0 0.0
        %1123 = vmatprep.mubr.f32.mxu0 0.0
        %1124 = vmatmul.mubr.f32.gmra.mxu0 %v515
        %v1125 = vpop.f32.mrf.mxu0
        %v1126 = vadd.f32 0.0, %v1125
        %v1127 = vpop.f32.mrf.mxu0
        %1128 = vmatprep.mubr.f32.mxu0 0.0
        %1129 = vmatmul.mubr.f32.gmra.mxu0 %v518
        %v1130 = vpop.f32.mrf.mxu0
        %v1131 = vadd.f32 0.0, %v1130
        %v1132 = vpop.f32.mrf.mxu0
        %1133 = vdwg.mxu0
        %v1134 = vpack.c.bf16 %v983, %v982
        %s1135 = scalar_lea.vmem [#allocation7], 64
        %v1136 = vld [vmem:[%s1135] sm:$0xf]
        %v1137 = vld [vmem:[%s1135 + $0x4] sm:$0xf]
        %v1138 = vld [vmem:[%s1135 + $0x8] sm:$0xf]
        %v1139 = vld [vmem:[%s1135 + $0xc] sm:$0xf]
        %v1140 = vld [vmem:[%s1135 + $0x10] sm:$0xf]
        %v1141 = vld [vmem:[%s1135 + $0x14] sm:$0xf]
        %v1142 = vld [vmem:[%s1135 + $0x18] sm:$0xf]
        %v1143 = vld [vmem:[%s1135 + $0x1c] sm:$0xf]
        %v1144 = vld [vmem:[%s1135 + $0x20] sm:$0xf]
        %v1145 = vld [vmem:[%s1135 + $0x24] sm:$0xf]
        %v1146 = vld [vmem:[%s1135 + $0x28] sm:$0xf]
        %v1147 = vld [vmem:[%s1135 + $0x2c] sm:$0xf]
        %v1148 = vld [vmem:[%s1135 + $0x30] sm:$0xf]
        %v1149 = vld [vmem:[%s1135 + $0x34] sm:$0xf]
        %v1150 = vld [vmem:[%s1135 + $0x38] sm:$0xf]
        %v1151 = vld [vmem:[%s1135 + $0x3c] sm:$0xf]
        %v1152 = vpack.c.bf16 %v1056, %v1051
        %s1153 = scalar_lea.vmem [#allocation7], 128
        %v1154 = vld [vmem:[%s1153] sm:$0xf]
        %v1155 = vld [vmem:[%s1153 + $0x4] sm:$0xf]
        %v1156 = vld [vmem:[%s1153 + $0x8] sm:$0xf]
        %v1157 = vld [vmem:[%s1153 + $0xc] sm:$0xf]
        %v1158 = vld [vmem:[%s1153 + $0x10] sm:$0xf]
        %v1159 = vld [vmem:[%s1153 + $0x14] sm:$0xf]
        %v1160 = vld [vmem:[%s1153 + $0x18] sm:$0xf]
        %v1161 = vld [vmem:[%s1153 + $0x1c] sm:$0xf]
        %v1162 = vld [vmem:[%s1153 + $0x20] sm:$0xf]
        %v1163 = vld [vmem:[%s1153 + $0x24] sm:$0xf]
        %v1164 = vld [vmem:[%s1153 + $0x28] sm:$0xf]
        %v1165 = vld [vmem:[%s1153 + $0x2c] sm:$0xf]
        %v1166 = vld [vmem:[%s1153 + $0x30] sm:$0xf]
        %v1167 = vld [vmem:[%s1153 + $0x34] sm:$0xf]
        %v1168 = vld [vmem:[%s1153 + $0x38] sm:$0xf]
        %v1169 = vld [vmem:[%s1153 + $0x3c] sm:$0xf]
        %v1186 = vunpack.c.l.b16 %v1154
        %v1187 = vunpack.c.l.b16 %v1155
        %v1188 = vunpack.c.l.b16 %v1156
        %v1189 = vunpack.c.l.b16 %v1157
        %v1190 = vunpack.c.l.b16 %v1158
        %v1191 = vunpack.c.l.b16 %v1159
        %v1192 = vunpack.c.l.b16 %v1160
        %v1193 = vunpack.c.l.b16 %v1161
        %v1194 = vunpack.c.l.b16 %v1162
        %v1195 = vunpack.c.l.b16 %v1163
        %v1196 = vunpack.c.l.b16 %v1164
        %v1197 = vunpack.c.l.b16 %v1165
        %v1198 = vunpack.c.l.b16 %v1166
        %v1199 = vunpack.c.l.b16 %v1167
        %v1200 = vunpack.c.l.b16 %v1168
        %v1201 = vunpack.c.l.b16 %v1169
        %v1202 = vpack.c.b16 %v1187, %v1186
        %v1203 = vpack.c.b16 %v1189, %v1188
        %v1204 = vpack.c.b16 %v1191, %v1190
        %v1205 = vpack.c.b16 %v1193, %v1192
        %v1206 = vpack.c.b16 %v1195, %v1194
        %v1207 = vpack.c.b16 %v1197, %v1196
        %v1208 = vpack.c.b16 %v1199, %v1198
        %v1209 = vpack.c.b16 %v1201, %v1200
        %1218 = vmatprep.subr.bf16.mxu0 0
        %1219 = vmatpush1.bf16.msra.mxu0 %v1209
        %1220 = vmatprep.subr.bf16.mxu0 0
        %1221 = vmatpush1.bf16.msra.mxu0 %v1208
        %1222 = vmatprep.subr.bf16.mxu0 0
        %1223 = vmatpush1.bf16.msra.mxu0 %v1207
        %1224 = vmatprep.subr.bf16.mxu0 0
        %1225 = vmatpush1.bf16.msra.mxu0 %v1206
        %1226 = vmatprep.subr.bf16.mxu0 0
        %1227 = vmatpush1.bf16.msra.mxu0 %v1205
        %1228 = vmatprep.subr.bf16.mxu0 0
        %1229 = vmatpush1.bf16.msra.mxu0 %v1204
        %1230 = vmatprep.subr.bf16.mxu0 0
        %1231 = vmatpush1.bf16.msra.mxu0 %v1203
        %1232 = vmatprep.subr.bf16.mxu0 0
        %1233 = vmatpush1.bf16.msra.mxu0 %v1202
        %1234 = vmatprep.subr.bf16.mxu0 0
        %1235 = vmatpush2.bf16.msra.mxu0 0
        %1236 = vmatprep.subr.bf16.mxu0 0
        %1237 = vmatpush2.bf16.msra.mxu0 0
        %1238 = vmatprep.subr.bf16.mxu0 0
        %1239 = vmatpush2.bf16.msra.mxu0 0
        %1240 = vmatprep.subr.bf16.mxu0 0
        %1241 = vmatpush2.bf16.msra.mxu0 0
        %1242 = vmatprep.subr.bf16.mxu0 0
        %1243 = vmatpush2.bf16.msra.mxu0 0
        %1244 = vmatprep.subr.bf16.mxu0 0
        %1245 = vmatpush2.bf16.msra.mxu0 0
        %1246 = vmatprep.subr.bf16.mxu0 0
        %1247 = vmatpush2.bf16.msra.mxu0 0
        %1248 = vmatprep.subr.bf16.mxu0 0
        %1249 = vmatpush2.bf16.msra.mxu0 0
        %1250 = vmatprep.mubr.bf16.mxu0 0
        %1251 = vmatmul.mubr.bf16.gmra.mxu0 %v1152
        %v1252 = vpop.f32.mrf.mxu0
        %v1253 = vadd.f32 0.0, %v1252
        %v1254 = vpop.f32.mrf.mxu0
        %v1255 = vpop.f32.mrf.mxu0
        %v1256 = vadd.f32 0.0, %v1255
        %v1257 = vpop.f32.mrf.mxu0
        %1258 = vdwg.mxu0
        %v1275 = vunpack.c.l.b16 %v1136
        %v1276 = vunpack.c.l.b16 %v1137
        %v1277 = vunpack.c.l.b16 %v1138
        %v1278 = vunpack.c.l.b16 %v1139
        %v1279 = vunpack.c.l.b16 %v1140
        %v1280 = vunpack.c.l.b16 %v1141
        %v1281 = vunpack.c.l.b16 %v1142
        %v1282 = vunpack.c.l.b16 %v1143
        %v1283 = vunpack.c.l.b16 %v1144
        %v1284 = vunpack.c.l.b16 %v1145
        %v1285 = vunpack.c.l.b16 %v1146
        %v1286 = vunpack.c.l.b16 %v1147
        %v1287 = vunpack.c.l.b16 %v1148
        %v1288 = vunpack.c.l.b16 %v1149
        %v1289 = vunpack.c.l.b16 %v1150
        %v1290 = vunpack.c.l.b16 %v1151
        %v1291 = vpack.c.b16 %v1276, %v1275
        %v1292 = vpack.c.b16 %v1278, %v1277
        %v1293 = vpack.c.b16 %v1280, %v1279
        %v1294 = vpack.c.b16 %v1282, %v1281
        %v1295 = vpack.c.b16 %v1284, %v1283
        %v1296 = vpack.c.b16 %v1286, %v1285
        %v1297 = vpack.c.b16 %v1288, %v1287
        %v1298 = vpack.c.b16 %v1290, %v1289
        %1307 = vmatprep.subr.bf16.mxu0 0
        %1308 = vmatpush1.bf16.msra.mxu0 %v1298
        %1309 = vmatprep.subr.bf16.mxu0 0
        %1310 = vmatpush1.bf16.msra.mxu0 %v1297
        %1311 = vmatprep.subr.bf16.mxu0 0
        %1312 = vmatpush1.bf16.msra.mxu0 %v1296
        %1313 = vmatprep.subr.bf16.mxu0 0
        %1314 = vmatpush1.bf16.msra.mxu0 %v1295
        %1315 = vmatprep.subr.bf16.mxu0 0
        %1316 = vmatpush1.bf16.msra.mxu0 %v1294
        %1317 = vmatprep.subr.bf16.mxu0 0
        %1318 = vmatpush1.bf16.msra.mxu0 %v1293
        %1319 = vmatprep.subr.bf16.mxu0 0
        %1320 = vmatpush1.bf16.msra.mxu0 %v1292
        %1321 = vmatprep.subr.bf16.mxu0 0
        %1322 = vmatpush1.bf16.msra.mxu0 %v1291
        %1323 = vmatprep.subr.bf16.mxu0 0
        %1324 = vmatpush2.bf16.msra.mxu0 0
        %1325 = vmatprep.subr.bf16.mxu0 0
        %1326 = vmatpush2.bf16.msra.mxu0 0
        %1327 = vmatprep.subr.bf16.mxu0 0
        %1328 = vmatpush2.bf16.msra.mxu0 0
        %1329 = vmatprep.subr.bf16.mxu0 0
        %1330 = vmatpush2.bf16.msra.mxu0 0
        %1331 = vmatprep.subr.bf16.mxu0 0
        %1332 = vmatpush2.bf16.msra.mxu0 0
        %1333 = vmatprep.subr.bf16.mxu0 0
        %1334 = vmatpush2.bf16.msra.mxu0 0
        %1335 = vmatprep.subr.bf16.mxu0 0
        %1336 = vmatpush2.bf16.msra.mxu0 0
        %1337 = vmatprep.subr.bf16.mxu0 0
        %1338 = vmatpush2.bf16.msra.mxu0 0
        %1339 = vmatprep.mubr.bf16.mxu0 0
        %1340 = vmatmul.mubr.bf16.gmra.mxu0 %v1134
        %v1341 = vpop.f32.mrf.mxu0
        %v1342 = vadd.f32 %v1253, %v1341
        %v1343 = vpop.f32.mrf.mxu0
        %v1344 = vpop.f32.mrf.mxu0
        %v1345 = vadd.f32 %v1256, %v1344
        %v1346 = vpop.f32.mrf.mxu0
        %1347 = vdwg.mxu0
        %v1348 = vpack.c.bf16 %v1131, %v1126
        %v1349 = vld [vmem:[#allocation7] sm:$0xf]
        %v1350 = vld [vmem:[#allocation7 + $0x4] sm:$0xf]
        %v1351 = vld [vmem:[#allocation7 + $0x8] sm:$0xf]
        %v1352 = vld [vmem:[#allocation7 + $0xc] sm:$0xf]
        %v1353 = vld [vmem:[#allocation7 + $0x10] sm:$0xf]
        %v1354 = vld [vmem:[#allocation7 + $0x14] sm:$0xf]
        %v1355 = vld [vmem:[#allocation7 + $0x18] sm:$0xf]
        %v1356 = vld [vmem:[#allocation7 + $0x1c] sm:$0xf]
        %v1357 = vld [vmem:[#allocation7 + $0x20] sm:$0xf]
        %v1358 = vld [vmem:[#allocation7 + $0x24] sm:$0xf]
        %v1359 = vld [vmem:[#allocation7 + $0x28] sm:$0xf]
        %v1360 = vld [vmem:[#allocation7 + $0x2c] sm:$0xf]
        %v1361 = vld [vmem:[#allocation7 + $0x30] sm:$0xf]
        %v1362 = vld [vmem:[#allocation7 + $0x34] sm:$0xf]
        %v1363 = vld [vmem:[#allocation7 + $0x38] sm:$0xf]
        %v1364 = vld [vmem:[#allocation7 + $0x3c] sm:$0xf]
        %v1381 = vunpack.c.l.b16 %v1349
        %v1382 = vunpack.c.l.b16 %v1350
        %v1383 = vunpack.c.l.b16 %v1351
        %v1384 = vunpack.c.l.b16 %v1352
        %v1385 = vunpack.c.l.b16 %v1353
        %v1386 = vunpack.c.l.b16 %v1354
        %v1387 = vunpack.c.l.b16 %v1355
        %v1388 = vunpack.c.l.b16 %v1356
        %v1389 = vunpack.c.l.b16 %v1357
        %v1390 = vunpack.c.l.b16 %v1358
        %v1391 = vunpack.c.l.b16 %v1359
        %v1392 = vunpack.c.l.b16 %v1360
        %v1393 = vunpack.c.l.b16 %v1361
        %v1394 = vunpack.c.l.b16 %v1362
        %v1395 = vunpack.c.l.b16 %v1363
        %v1396 = vunpack.c.l.b16 %v1364
        %v1397 = vpack.c.b16 %v1382, %v1381
        %v1398 = vpack.c.b16 %v1384, %v1383
        %v1399 = vpack.c.b16 %v1386, %v1385
        %v1400 = vpack.c.b16 %v1388, %v1387
        %v1401 = vpack.c.b16 %v1390, %v1389
        %v1402 = vpack.c.b16 %v1392, %v1391
        %v1403 = vpack.c.b16 %v1394, %v1393
        %v1404 = vpack.c.b16 %v1396, %v1395
        %1413 = vmatprep.subr.bf16.mxu0 0
        %1414 = vmatpush1.bf16.msra.mxu0 %v1404
        %1415 = vmatprep.subr.bf16.mxu0 0
        %1416 = vmatpush1.bf16.msra.mxu0 %v1403
        %1417 = vmatprep.subr.bf16.mxu0 0
        %1418 = vmatpush1.bf16.msra.mxu0 %v1402
        %1419 = vmatprep.subr.bf16.mxu0 0
        %1420 = vmatpush1.bf16.msra.mxu0 %v1401
        %1421 = vmatprep.subr.bf16.mxu0 0
        %1422 = vmatpush1.bf16.msra.mxu0 %v1400
        %1423 = vmatprep.subr.bf16.mxu0 0
        %1424 = vmatpush1.bf16.msra.mxu0 %v1399
        %1425 = vmatprep.subr.bf16.mxu0 0
        %1426 = vmatpush1.bf16.msra.mxu0 %v1398
        %1427 = vmatprep.subr.bf16.mxu0 0
        %1428 = vmatpush1.bf16.msra.mxu0 %v1397
        %1429 = vmatprep.subr.bf16.mxu0 0
        %1430 = vmatpush2.bf16.msra.mxu0 0
        %1431 = vmatprep.subr.bf16.mxu0 0
        %1432 = vmatpush2.bf16.msra.mxu0 0
        %1433 = vmatprep.subr.bf16.mxu0 0
        %1434 = vmatpush2.bf16.msra.mxu0 0
        %1435 = vmatprep.subr.bf16.mxu0 0
        %1436 = vmatpush2.bf16.msra.mxu0 0
        %1437 = vmatprep.subr.bf16.mxu0 0
        %1438 = vmatpush2.bf16.msra.mxu0 0
        %1439 = vmatprep.subr.bf16.mxu0 0
        %1440 = vmatpush2.bf16.msra.mxu0 0
        %1441 = vmatprep.subr.bf16.mxu0 0
        %1442 = vmatpush2.bf16.msra.mxu0 0
        %1443 = vmatprep.subr.bf16.mxu0 0
        %1444 = vmatpush2.bf16.msra.mxu0 0
        %1445 = vmatprep.mubr.bf16.mxu0 0
        %1446 = vmatmul.mubr.bf16.gmra.mxu0 %v1348
        %v1447 = vpop.f32.mrf.mxu0
        %v1448 = vadd.f32 0.0, %v1447
        %v1449 = vpop.f32.mrf.mxu0
        %v1450 = vpop.f32.mrf.mxu0
        %v1451 = vadd.f32 0.0, %v1450
        %v1452 = vpop.f32.mrf.mxu0
        %1453 = vdwg.mxu0
        %v1454 = vadd.f32 %v1342, %v1448
        %v1455 = vadd.f32 %v1345, %v1451
        %v1456 = vld [vmem:[%s7] sm:$0x1]
        %v1458 = vlaneseq
        %v1459 = vshrl.u32 %v1458, 7
        %v1460 = vsub.s32 0, %v1459
        %v1461 = vrot.slane %v1456, %v1460
        %v1463 = vadd.f32 %v1454, %v1461
        %v1464 = vadd.f32 %v1455, %v1461
        %v1465 = vld [vmem:[%s8] sm:$0x1]
        %v1466 = vld [vmem:[%s9] sm:$0x1]
        %v1467 = vadd.f32 %v1463, %v1464
        %v1468 = vrot.slane %v1467, 4
        %v1469 = vadd.f32 %v1467, %v1468
        %v1470 = vrot.slane %v1469, 2
        %v1471 = vadd.f32 %v1469, %v1470
        %v1472 = vrot.slane %v1471, 1
        %v1473 = vadd.f32 %v1471, %v1472
        %v1474 = vmul.f32 %v1463, %v1463
        %v1475 = vmul.f32 %v1464, %v1464
        %v1476 = vadd.f32 %v1474, %v1475
        %v1477 = vrot.slane %v1476, 4
        %v1478 = vadd.f32 %v1476, %v1477
        %v1479 = vrot.slane %v1478, 2
        %v1480 = vadd.f32 %v1478, %v1479
        %v1481 = vrot.slane %v1480, 1
        %v1482 = vadd.f32 %v1480, %v1481
        %v1483 = vmul.f32 %v1473, %v860
        %v1484 = vsel %vm862, %v1483, 0.0
        %1485 = vadd.xlane.f32.xlu0 %v1484
        %v1486 = vpop.xlane.xlu0 %1485
        %v1487 = vrot.slane %v1486, 4
        %v1488 = vadd.f32 %v1486, %v1487
        %v1489 = vrot.slane %v1488, 2
        %v1490 = vadd.f32 %v1488, %v1489
        %v1491 = vrot.slane %v1490, 1
        %v1492 = vadd.f32 %v1490, %v1491
        %s1493 = vtos %v1492
        %v1494 = vstv %s1493
        %v1495 = vmul.f32 %v1494, %v874
        %v1496 = vmul.f32 %v1482, %v860
        %v1497 = vsel %vm862, %v1496, 0.0
        %1498 = vadd.xlane.f32.xlu0 %v1497
        %v1499 = vpop.xlane.xlu0 %1498
        %v1500 = vrot.slane %v1499, 4
        %v1501 = vadd.f32 %v1499, %v1500
        %v1502 = vrot.slane %v1501, 2
        %v1503 = vadd.f32 %v1501, %v1502
        %v1504 = vrot.slane %v1503, 1
        %v1505 = vadd.f32 %v1503, %v1504
        %s1506 = vtos %v1505
        %v1507 = vstv %s1506
        %v1508 = vmul.f32 %v1507, %v874
        %v1509 = vmul.f32 %v1495, %v1495
        %v1510 = vsub.f32 %v1508, %v1509
        %v1511 = vmul.f32 %v1495, %v860
        %v1512 = vadd.f32 %v1511, 0.0
        %v1513 = vadd.f32 %v1510, 1e-05
        %v1514 = vrsqrt.pop %v1513
        %v1515 = vmul.f32 %v1514, %v860
        %v1516 = vadd.f32 %v1515, 0.0
        %v1517 = vmul.f32 %v1473, %v899
        %v1518 = vsel %vm862, %v1517, 0.0
        %1519 = vadd.xlane.f32.xlu0 %v1518
        %v1520 = vpop.xlane.xlu0 %1519
        %v1521 = vrot.slane %v1520, 4
        %v1522 = vadd.f32 %v1520, %v1521
        %v1523 = vrot.slane %v1522, 2
        %v1524 = vadd.f32 %v1522, %v1523
        %v1525 = vrot.slane %v1524, 1
        %v1526 = vadd.f32 %v1524, %v1525
        %s1527 = vtos %v1526
        %v1528 = vstv %s1527
        %v1529 = vmul.f32 %v1528, %v874
        %v1530 = vmul.f32 %v1482, %v899
        %v1531 = vsel %vm862, %v1530, 0.0
        %1532 = vadd.xlane.f32.xlu0 %v1531
        %v1533 = vpop.xlane.xlu0 %1532
        %v1534 = vrot.slane %v1533, 4
        %v1535 = vadd.f32 %v1533, %v1534
        %v1536 = vrot.slane %v1535, 2
        %v1537 = vadd.f32 %v1535, %v1536
        %v1538 = vrot.slane %v1537, 1
        %v1539 = vadd.f32 %v1537, %v1538
        %s1540 = vtos %v1539
        %v1541 = vstv %s1540
        %v1542 = vmul.f32 %v1541, %v874
        %v1543 = vmul.f32 %v1529, %v1529
        %v1544 = vsub.f32 %v1542, %v1543
        %v1545 = vmul.f32 %v1529, %v899
        %v1546 = vadd.f32 %v1512, %v1545
        %v1547 = vadd.f32 %v1544, 1e-05
        %v1548 = vrsqrt.pop %v1547
        %v1549 = vmul.f32 %v1548, %v899
        %v1550 = vadd.f32 %v1516, %v1549
        %v1552 = vlaneseq
        %v1553 = vshrl.u32 %v1552, 7
        %v1554 = vsub.s32 0, %v1553
        %v1555 = vrot.slane %v1546, %v1554
        %v1557 = vsub.f32 %v1463, %v1555
        %v1558 = vsub.f32 %v1464, %v1555
        %v1560 = vlaneseq
        %v1561 = vshrl.u32 %v1560, 7
        %v1562 = vsub.s32 0, %v1561
        %v1563 = vrot.slane %v1550, %v1562
        %v1565 = vmul.f32 %v1557, %v1563
        %v1566 = vmul.f32 %v1558, %v1563
        %v1568 = vlaneseq
        %v1569 = vshrl.u32 %v1568, 7
        %v1570 = vsub.s32 0, %v1569
        %v1571 = vrot.slane %v1465, %v1570
        %v1573 = vmul.f32 %v1565, %v1571
        %v1574 = vmul.f32 %v1566, %v1571
        %v1576 = vlaneseq
        %v1577 = vshrl.u32 %v1576, 7
        %v1578 = vsub.s32 0, %v1577
        %v1579 = vrot.slane %v1466, %v1578
        %v1581 = vadd.f32 %v1573, %v1579
        %v1582 = vadd.f32 %v1574, %v1579
        %v1583 = vmul.f32 %v1581, 0.5
        %v1584 = vmul.f32 %v1582, 0.5
        %v1585 = vmul.f32 %v1581, 0.044715
        %v1586 = vmul.f32 %v1582, 0.044715
        %v1587 = vmul.f32 %v1585, %v1581
        %v1588 = vmul.f32 %v1586, %v1582
        %v1589 = vmul.f32 %v1587, %v1581
        %v1590 = vmul.f32 %v1588, %v1582
        %v1591 = vadd.f32 %v1581, %v1589
        %v1592 = vadd.f32 %v1582, %v1590
        %v1593 = vmul.f32 %v1591, 0.7978846
        %v1594 = vmul.f32 %v1592, 0.7978846
        %v1595 = vtanh.pop %v1593
        %v1596 = vtanh.pop %v1594
        %v1597 = vadd.f32 %v1595, 1.0
        %v1598 = vadd.f32 %v1596, 1.0
        %v1599 = vmul.f32 %v1583, %v1597
        %v1600 = vmul.f32 %v1584, %v1598
        %1601 = vst [vmem:[%s406] sm:$0xff] %v1599
        %1602 = vst [vmem:[%s406 + $0x8] sm:$0xff] %v1600
        %s1603 = sand.u32 %s251, 1
        %s1604 = scalar_lea.sflag [#allocation4], %s1603
        %s1605 = sand.u32 %s251, 1
        %s1606 = smul.addr %s1605, 16
        %s1607 = scalar_lea.vmem [#allocation8], %s1606
        // Predicated region
        $region73: #{tpu_custom_call.1} parent=59 // pred_check
          %p1608 = pneg %p261
        $region74: #{tpu_custom_call.1} parent=59 // pred_check_branch
          %1610 = sbr.rel (%p1608) target = $region76
        $region75: #{tpu_custom_call.1} parent=59 // pred_region
          %s1612 = ssub.s32 256, 256
          %1613 = vsyncadd %s1604, %s1612
          %s1614 = smul.addr %s28, 2
          %s1615 = smul.addr %s1614, 128
          %s1616 = scalar_lea.hbm %s10, %s1615
          %s1617 = sshll.u32 %s1607, 4
          %s1618 = int_to_ptr.vmem [resolvable:$true] %s1617
          %1623 = dma.vmem_to_hbm [thread:$0]  %s1618, 256, %s1616, %s1604, 128, 128, 8
        $region76: #{tpu_custom_call.1} parent=59 // pred_fallthru
          _
      $region60: #{tpu_custom_call.1} parent=5 // pred_fallthru
        _
      %p1624 = scmp.le.s32.totalorder 2, %s23
      // Predicated region
      $region77: #{tpu_custom_call.1} parent=5 // pred_check
        %p1625 = pneg %p1624
      $region78: #{tpu_custom_call.1} parent=5 // pred_check_branch
        %1627 = sbr.rel (%p1625) target = $region80
      $region79: #{tpu_custom_call.1} parent=5 // pred_region
        %s1628 = ssub.s32 %s23, 2
        // Predicated region
        $region81: #{tpu_custom_call.1} parent=79 // pred_check
          %p1629 = pneg %p267
        $region82: #{tpu_custom_call.1} parent=79 // pred_check_branch
          %1631 = sbr.rel (%p1629) target = $region84
        $region83: #{tpu_custom_call.1} parent=79 // pred_region
          %s1632 = sand.u32 %s252, 1
          %s1633 = scalar_lea.sflag [#allocation4], %s1632
          %s1634 = sand.u32 %s252, 1
          %s1635 = smul.addr %s1634, 16
          %s1636 = scalar_lea.vmem [#allocation8], %s1635
          %1637 = dma.done %s1633, 256
        $region84: #{tpu_custom_call.1} parent=79 // pred_fallthru
          _
      $region80: #{tpu_custom_call.1} parent=5 // pred_fallthru
        _
    $region6: #{tpu_custom_call.1} parent=1 // loop_footer
      %s27 = sadd.s32 1, %s23
    $region7: #{tpu_custom_call.1} parent=1 // loop_footer_branch
      %22 = sbr.rel target = $region3
    $region8: #{tpu_custom_call.1} parent=1 // loop_exit
      _
    %1638 = vsyncpa [#allocation3], 1
    %s1639 = scalar_lea.sflag [#allocation3], 1
    %1640 = vsyncpa %s1639, 1
    %1641 = vsyncpa [#allocation6], 1
    %1642 = vsyncpa [#allocation4], 1
    %s1643 = scalar_lea.sflag [#allocation4], 1
    %1644 = vsyncpa %s1643, 1

</llo_original>
